<compile_context>
chip_gen: v5e
topology: v5e:2x2
jax: 0.10.0
libtpu: 0.0.40
codegen_flags: <defaults>
</compile_context>

<pallas_src>
import jax
import jax.numpy as jnp
from jax.experimental import pallas as pl
from jax.experimental.pallas import tpu as pltpu


def make_textmodel_kernel(S, B, H, n_hidden):
    """Build the kernel closure for static S, padded batch B, hidden size H and
    n_hidden = len(hidden_list) - 1 hidden Linear layers."""
    G = 4 * H

    def kernel(x_ref, w_ih_ref, w_hh_ref, b_ref, *rest):
        # x_ref:    (B, S, I)   batch-first input (padded batch)
        # w_ih_ref: (I, 4H)     LSTM input weights, gate cols ordered [i, f, o, g]
        # w_hh_ref: (H, 4H)     LSTM hidden weights, same ordering
        # b_ref:    (1, 4H)     fused b_ih + b_hh, same ordering
        # rest:     n_hidden x (w, b) hidden Linears, then wout (H2, O_pad),
        #           bout (1, O_pad), then out_ref (B, O_pad)
        hidden_refs = rest[:2 * n_hidden]
        wout_ref, bout_ref, out_ref = rest[2 * n_hidden:]

        x = x_ref[...]                                   # (B, S, I)
        I = x.shape[-1]
        w_ih = w_ih_ref[...]
        w_hh = w_hh_ref[...]
        b = b_ref[...]

        # --- Hoisted input projection: one batched MXU matmul, off the
        # serial per-timestep dependency chain. ---------------------------------
        gx = jnp.dot(x.reshape(B * S, I), w_ih,
                     preferred_element_type=jnp.float32) + b       # (B*S, 4H)
        gx = gx.reshape(B, S, G)                                    # (B, S, 4H)

        h = jnp.zeros((B, H), jnp.float32)
        c = jnp.zeros((B, H), jnp.float32)

        # --- Fully unrolled recurrence (S is static & small); inside each step
        # only the recurrent h @ w_hh matmul + elementwise LSTM math remain. ----
        for t in range(S):
            gates = gx[:, t, :] + jnp.dot(h, w_hh,
                                          preferred_element_type=jnp.float32)
            # Gate columns are pre-permuted to [i, f, o, g]:
            #   single sigmoid over the first 3H lanes, single tanh over last H.
            sig = jax.nn.sigmoid(gates[:, :3 * H])
            g_g = jnp.tanh(gates[:, 3 * H:])
            i_g = sig[:, :H]
            f_g = sig[:, H:2 * H]
            o_g = sig[:, 2 * H:]
            c = f_g * c + i_g * g_g
            h = o_g * jnp.tanh(c)
        # h == lstm_out[:, -1, :]

        # --- Hidden Linear stack: Linear -> act_func (ReLU) -> dropout --------
        z = h
        for li in range(n_hidden):
            w = hidden_refs[2 * li][...]
            bb = hidden_refs[2 * li + 1][...]
            z = jnp.dot(z, w, preferred_element_type=jnp.float32) + bb
            z = jnp.maximum(z, 0.0)
            # TODO(synk): nn.Dropout(0.5) is identity in eval mode; training-mode dropout not implemented.

        # --- Output Linear (lane-padded to 128 for a dense store) -------------
        out = jnp.dot(z, wout_ref[...],
                      preferred_element_type=jnp.float32) + bout_ref[...]
        out_ref[...] = out.astype(out_ref.dtype)

    return kernel


def textmodel_forward(x, params):
    """x: (B, S, I) batch-first, like the PyTorch module (eval mode)."""
    w_ih, w_hh, b, hidden, wout, bout = params
    B, S, I = x.shape
    H = w_hh.shape[0]
    O = wout.shape[1]
    n_hidden = len(hidden)

    # Pad batch to a multiple of 8 (f32 sublane count). Zero rows are harmless
    # (their h/c stay self-contained) and are sliced off after the call.
    B_pad = ((B + 7) // 8) * 8
    if B_pad != B:
        x = jnp.pad(x, ((0, B_pad - B), (0, 0), (0, 0)))

    # Pad the output feature dim to a multiple of 128 so the final store is a
    # lane-dense (unmasked) vst; slice back afterwards.
    O_pad = ((O + 127) // 128) * 128
    if O_pad != O:
        wout = jnp.pad(wout, ((0, 0), (0, O_pad - O)))
        bout = jnp.pad(bout, ((0, 0), (0, O_pad - O)))

    # Reorder LSTM gate columns from PyTorch's [i, f, g, o] to [i, f, o, g]
    # (host-side, once) so the kernel issues one sigmoid + one tanh per step.
    def reorder(m):
        return jnp.concatenate(
            [m[:, :2 * H], m[:, 3 * H:4 * H], m[:, 2 * H:3 * H]], axis=1)

    w_ih_k = reorder(w_ih)
    w_hh_k = reorder(w_hh)
    b_k = reorder(b)

    flat_hidden = []
    for (w, bb) in hidden:
        flat_hidden += [w, bb]

    kernel = make_textmodel_kernel(S, B_pad, H, n_hidden)
    vmem = pl.BlockSpec(memory_space=pltpu.MemorySpace.VMEM)
    n_inputs = 4 + 2 * n_hidden + 2

    out = pl.pallas_call(
        kernel,
        out_shape=jax.ShapeDtypeStruct((B_pad, O_pad), jnp.float32),
        in_specs=[vmem] * n_inputs,
        out_specs=vmem,
    )(x, w_ih_k, w_hh_k, b_k, *flat_hidden, wout, bout)

    return out[:B, :O]


def init_params(key, input_size, hidden_list, output_size):
    """Deterministic synthetic init matching the PyTorch parameter shapes.
    All weight matrices are stored pre-transposed as (in_features, out_features);
    LSTM gate columns are in PyTorch order [i, f, g, o]."""
    H = hidden_list[0]
    n_hidden = len(hidden_list) - 1
    ks = jax.random.split(key, 6 + 2 * n_hidden)
    scale = 1.0 / jnp.sqrt(jnp.float32(H))

    w_ih = jax.random.uniform(ks[0], (input_size, 4 * H), jnp.float32, -scale, scale)
    w_hh = jax.random.uniform(ks[1], (H, 4 * H), jnp.float32, -scale, scale)
    b_ih = jax.random.uniform(ks[2], (1, 4 * H), jnp.float32, -scale, scale)
    b_hh = jax.random.uniform(ks[3], (1, 4 * H), jnp.float32, -scale, scale)
    b = b_ih + b_hh

    hidden = []
    for li in range(n_hidden):
        s = 1.0 / jnp.sqrt(jnp.float32(hidden_list[li]))
        w = jax.random.uniform(ks[4 + 2 * li], (hidden_list[li], hidden_list[li + 1]),
                               jnp.float32, -s, s)
        bb = jax.random.uniform(ks[5 + 2 * li], (1, hidden_list[li + 1]),
                                jnp.float32, -s, s)
        hidden.append((w, bb))

    s2 = 1.0 / jnp.sqrt(jnp.float32(hidden_list[-1]))
    wout = jax.random.uniform(ks[4 + 2 * n_hidden], (hidden_list[-1], output_size),
                              jnp.float32, -s2, s2)
    bout = jax.random.uniform(ks[5 + 2 * n_hidden], (1, output_size),
                              jnp.float32, -s2, s2)
    return (w_ih, w_hh, b, hidden, wout, bout)


def reference_forward(x, params):
    """Pure-JAX reference of the same forward pass (eval mode), PyTorch gate order."""
    w_ih, w_hh, b, hidden, wout, bout = params
    B, S, I = x.shape
    H = w_hh.shape[0]
    h = jnp.zeros((B, H), jnp.float32)
    c = jnp.zeros((B, H), jnp.float32)
    for t in range(S):
        gates = x[:, t, :] @ w_ih + h @ w_hh + b
        i_g = jax.nn.sigmoid(gates[:, 0:H])
        f_g = jax.nn.sigmoid(gates[:, H:2 * H])
        g_g = jnp.tanh(gates[:, 2 * H:3 * H])
        o_g = jax.nn.sigmoid(gates[:, 3 * H:4 * H])
        c = f_g * c + i_g * g_g
        h = o_g * jnp.tanh(c)
    z = h
    for (w, bb) in hidden:
        z = jnp.maximum(z @ w + bb, 0.0)
    return z @ wout + bout


if __name__ == "__main__":
    # Shapes consistent with the module: batch=4, seq=8, input=16,
    # hidden_list=[32, 32], output=4, model='lstm', act_func=ReLU.
    B, S, I = 4, 8, 16
    hidden_list = [32, 32]
    O = 4

    key = jax.random.PRNGKey(0)
    k_x, k_p = jax.random.split(key)
    x = jax.random.normal(k_x, (B, S, I), jnp.float32)
    params = init_params(k_p, I, hidden_list, O)

    out = textmodel_forward(x, params)
    out = jax.block_until_ready(out)

    ref = reference_forward(x, params)
    assert out.shape == (B, O)
    assert jnp.allclose(out, ref, atol=1e-4, rtol=1e-4), "kernel mismatch vs reference"
    print("KERNEL_OK")
</pallas_src>

<mosaic_0001>
module attributes {stable_mosaic.version = 11 : i64} {
  func.func @kernel(%arg0: memref<8x8x16xf32, #tpu.memory_space<vmem>>, %arg1: memref<16x128xf32, #tpu.memory_space<vmem>>, %arg2: memref<32x128xf32, #tpu.memory_space<vmem>>, %arg3: memref<1x128xf32, #tpu.memory_space<vmem>>, %arg4: memref<32x32xf32, #tpu.memory_space<vmem>>, %arg5: memref<1x32xf32, #tpu.memory_space<vmem>>, %arg6: memref<32x128xf32, #tpu.memory_space<vmem>>, %arg7: memref<1x128xf32, #tpu.memory_space<vmem>>, %arg8: memref<8x128xf32, #tpu.memory_space<vmem>>) attributes {dimension_semantics = [], scalar_prefetch = 0 : i64, scratch_operands = 0 : i64, tpu.core_type = #tpu.core_type<tc>} {
    %c0 = arith.constant 0 : index
    %c0_0 = arith.constant 0 : index
    %c0_1 = arith.constant 0 : index
    %0 = vector.load %arg0[%c0, %c0_0, %c0_1] : memref<8x8x16xf32, #tpu.memory_space<vmem>>, vector<8x8x16xf32>
    %c0_2 = arith.constant 0 : index
    %c0_3 = arith.constant 0 : index
    %1 = vector.load %arg1[%c0_2, %c0_3] : memref<16x128xf32, #tpu.memory_space<vmem>>, vector<16x128xf32>
    %c0_4 = arith.constant 0 : index
    %c0_5 = arith.constant 0 : index
    %2 = vector.load %arg2[%c0_4, %c0_5] : memref<32x128xf32, #tpu.memory_space<vmem>>, vector<32x128xf32>
    %c0_6 = arith.constant 0 : index
    %c0_7 = arith.constant 0 : index
    %3 = vector.load %arg3[%c0_6, %c0_7] : memref<1x128xf32, #tpu.memory_space<vmem>>, vector<1x128xf32>
    %4 = vector.shape_cast %0 : vector<8x8x16xf32> to vector<64x16xf32>
    %cst = arith.constant dense<0.000000e+00> : vector<64x128xf32>
    %5 = tpu.matmul %4, %1, %cst {dimension_numbers = #tpu.dot_dimension_numbers<[1], [0], [0], [1], [0, 0, 1, 1], [], []>} : vector<64x16xf32>, vector<16x128xf32>, vector<64x128xf32> -> vector<64x128xf32>
    %6 = vector.broadcast %3 : vector<1x128xf32> to vector<64x128xf32>
    %7 = arith.addf %5, %6 : vector<64x128xf32>
    %8 = vector.shape_cast %7 : vector<64x128xf32> to vector<8x8x128xf32>
    %cst_8 = arith.constant 0.000000e+00 : f32
    %9 = vector.broadcast %cst_8 : f32 to vector<8x32xf32>
    %cst_9 = arith.constant 0.000000e+00 : f32
    %10 = vector.broadcast %cst_9 : f32 to vector<8x32xf32>
    %11 = vector.extract_strided_slice %8 {offsets = [0, 0, 0], sizes = [8, 1, 128], strides = [1, 1, 1]} : vector<8x8x128xf32> to vector<8x1x128xf32>
    %12 = vector.shape_cast %11 : vector<8x1x128xf32> to vector<8x128xf32>
    %cst_10 = arith.constant dense<0.000000e+00> : vector<8x128xf32>
    %13 = tpu.matmul %9, %2, %cst_10 {dimension_numbers = #tpu.dot_dimension_numbers<[1], [0], [0], [1], [0, 0, 1, 1], [], []>} : vector<8x32xf32>, vector<32x128xf32>, vector<8x128xf32> -> vector<8x128xf32>
    %14 = arith.addf %12, %13 : vector<8x128xf32>
    %15 = vector.extract_strided_slice %14 {offsets = [0, 0], sizes = [8, 96], strides = [1, 1]} : vector<8x128xf32> to vector<8x96xf32>
    %16 = arith.negf %15 : vector<8x96xf32>
    %17 = math.exp %16 : vector<8x96xf32>
    %cst_11 = arith.constant 1.000000e+00 : f32
    %18 = vector.broadcast %cst_11 : f32 to vector<8x96xf32>
    %19 = arith.addf %18, %17 : vector<8x96xf32>
    %20 = arith.divf %18, %19 : vector<8x96xf32>
    %21 = vector.extract_strided_slice %14 {offsets = [0, 96], sizes = [8, 32], strides = [1, 1]} : vector<8x128xf32> to vector<8x32xf32>
    %22 = math.tanh %21 : vector<8x32xf32>
    %23 = vector.extract_strided_slice %20 {offsets = [0, 0], sizes = [8, 32], strides = [1, 1]} : vector<8x96xf32> to vector<8x32xf32>
    %24 = vector.extract_strided_slice %20 {offsets = [0, 32], sizes = [8, 32], strides = [1, 1]} : vector<8x96xf32> to vector<8x32xf32>
    %25 = vector.extract_strided_slice %20 {offsets = [0, 64], sizes = [8, 32], strides = [1, 1]} : vector<8x96xf32> to vector<8x32xf32>
    %26 = arith.mulf %24, %10 : vector<8x32xf32>
    %27 = arith.mulf %23, %22 : vector<8x32xf32>
    %28 = arith.addf %26, %27 : vector<8x32xf32>
    %29 = math.tanh %28 : vector<8x32xf32>
    %30 = arith.mulf %25, %29 : vector<8x32xf32>
    %31 = vector.extract_strided_slice %8 {offsets = [0, 1, 0], sizes = [8, 1, 128], strides = [1, 1, 1]} : vector<8x8x128xf32> to vector<8x1x128xf32>
    %32 = vector.shape_cast %31 : vector<8x1x128xf32> to vector<8x128xf32>
    %cst_12 = arith.constant dense<0.000000e+00> : vector<8x128xf32>
    %33 = tpu.matmul %30, %2, %cst_12 {dimension_numbers = #tpu.dot_dimension_numbers<[1], [0], [0], [1], [0, 0, 1, 1], [], []>} : vector<8x32xf32>, vector<32x128xf32>, vector<8x128xf32> -> vector<8x128xf32>
    %34 = arith.addf %32, %33 : vector<8x128xf32>
    %35 = vector.extract_strided_slice %34 {offsets = [0, 0], sizes = [8, 96], strides = [1, 1]} : vector<8x128xf32> to vector<8x96xf32>
    %36 = arith.negf %35 : vector<8x96xf32>
    %37 = math.exp %36 : vector<8x96xf32>
    %cst_13 = arith.constant 1.000000e+00 : f32
    %38 = vector.broadcast %cst_13 : f32 to vector<8x96xf32>
    %39 = arith.addf %38, %37 : vector<8x96xf32>
    %40 = arith.divf %38, %39 : vector<8x96xf32>
    %41 = vector.extract_strided_slice %34 {offsets = [0, 96], sizes = [8, 32], strides = [1, 1]} : vector<8x128xf32> to vector<8x32xf32>
    %42 = math.tanh %41 : vector<8x32xf32>
    %43 = vector.extract_strided_slice %40 {offsets = [0, 0], sizes = [8, 32], strides = [1, 1]} : vector<8x96xf32> to vector<8x32xf32>
    %44 = vector.extract_strided_slice %40 {offsets = [0, 32], sizes = [8, 32], strides = [1, 1]} : vector<8x96xf32> to vector<8x32xf32>
    %45 = vector.extract_strided_slice %40 {offsets = [0, 64], sizes = [8, 32], strides = [1, 1]} : vector<8x96xf32> to vector<8x32xf32>
    %46 = arith.mulf %44, %28 : vector<8x32xf32>
    %47 = arith.mulf %43, %42 : vector<8x32xf32>
    %48 = arith.addf %46, %47 : vector<8x32xf32>
    %49 = math.tanh %48 : vector<8x32xf32>
    %50 = arith.mulf %45, %49 : vector<8x32xf32>
    %51 = vector.extract_strided_slice %8 {offsets = [0, 2, 0], sizes = [8, 1, 128], strides = [1, 1, 1]} : vector<8x8x128xf32> to vector<8x1x128xf32>
    %52 = vector.shape_cast %51 : vector<8x1x128xf32> to vector<8x128xf32>
    %cst_14 = arith.constant dense<0.000000e+00> : vector<8x128xf32>
    %53 = tpu.matmul %50, %2, %cst_14 {dimension_numbers = #tpu.dot_dimension_numbers<[1], [0], [0], [1], [0, 0, 1, 1], [], []>} : vector<8x32xf32>, vector<32x128xf32>, vector<8x128xf32> -> vector<8x128xf32>
    %54 = arith.addf %52, %53 : vector<8x128xf32>
    %55 = vector.extract_strided_slice %54 {offsets = [0, 0], sizes = [8, 96], strides = [1, 1]} : vector<8x128xf32> to vector<8x96xf32>
    %56 = arith.negf %55 : vector<8x96xf32>
    %57 = math.exp %56 : vector<8x96xf32>
    %cst_15 = arith.constant 1.000000e+00 : f32
    %58 = vector.broadcast %cst_15 : f32 to vector<8x96xf32>
    %59 = arith.addf %58, %57 : vector<8x96xf32>
    %60 = arith.divf %58, %59 : vector<8x96xf32>
    %61 = vector.extract_strided_slice %54 {offsets = [0, 96], sizes = [8, 32], strides = [1, 1]} : vector<8x128xf32> to vector<8x32xf32>
    %62 = math.tanh %61 : vector<8x32xf32>
    %63 = vector.extract_strided_slice %60 {offsets = [0, 0], sizes = [8, 32], strides = [1, 1]} : vector<8x96xf32> to vector<8x32xf32>
    %64 = vector.extract_strided_slice %60 {offsets = [0, 32], sizes = [8, 32], strides = [1, 1]} : vector<8x96xf32> to vector<8x32xf32>
    %65 = vector.extract_strided_slice %60 {offsets = [0, 64], sizes = [8, 32], strides = [1, 1]} : vector<8x96xf32> to vector<8x32xf32>
    %66 = arith.mulf %64, %48 : vector<8x32xf32>
    %67 = arith.mulf %63, %62 : vector<8x32xf32>
    %68 = arith.addf %66, %67 : vector<8x32xf32>
    %69 = math.tanh %68 : vector<8x32xf32>
    %70 = arith.mulf %65, %69 : vector<8x32xf32>
    %71 = vector.extract_strided_slice %8 {offsets = [0, 3, 0], sizes = [8, 1, 128], strides = [1, 1, 1]} : vector<8x8x128xf32> to vector<8x1x128xf32>
    %72 = vector.shape_cast %71 : vector<8x1x128xf32> to vector<8x128xf32>
    %cst_16 = arith.constant dense<0.000000e+00> : vector<8x128xf32>
    %73 = tpu.matmul %70, %2, %cst_16 {dimension_numbers = #tpu.dot_dimension_numbers<[1], [0], [0], [1], [0, 0, 1, 1], [], []>} : vector<8x32xf32>, vector<32x128xf32>, vector<8x128xf32> -> vector<8x128xf32>
    %74 = arith.addf %72, %73 : vector<8x128xf32>
    %75 = vector.extract_strided_slice %74 {offsets = [0, 0], sizes = [8, 96], strides = [1, 1]} : vector<8x128xf32> to vector<8x96xf32>
    %76 = arith.negf %75 : vector<8x96xf32>
    %77 = math.exp %76 : vector<8x96xf32>
    %cst_17 = arith.constant 1.000000e+00 : f32
    %78 = vector.broadcast %cst_17 : f32 to vector<8x96xf32>
    %79 = arith.addf %78, %77 : vector<8x96xf32>
    %80 = arith.divf %78, %79 : vector<8x96xf32>
    %81 = vector.extract_strided_slice %74 {offsets = [0, 96], sizes = [8, 32], strides = [1, 1]} : vector<8x128xf32> to vector<8x32xf32>
    %82 = math.tanh %81 : vector<8x32xf32>
    %83 = vector.extract_strided_slice %80 {offsets = [0, 0], sizes = [8, 32], strides = [1, 1]} : vector<8x96xf32> to vector<8x32xf32>
    %84 = vector.extract_strided_slice %80 {offsets = [0, 32], sizes = [8, 32], strides = [1, 1]} : vector<8x96xf32> to vector<8x32xf32>
    %85 = vector.extract_strided_slice %80 {offsets = [0, 64], sizes = [8, 32], strides = [1, 1]} : vector<8x96xf32> to vector<8x32xf32>
    %86 = arith.mulf %84, %68 : vector<8x32xf32>
    %87 = arith.mulf %83, %82 : vector<8x32xf32>
    %88 = arith.addf %86, %87 : vector<8x32xf32>
    %89 = math.tanh %88 : vector<8x32xf32>
    %90 = arith.mulf %85, %89 : vector<8x32xf32>
    %91 = vector.extract_strided_slice %8 {offsets = [0, 4, 0], sizes = [8, 1, 128], strides = [1, 1, 1]} : vector<8x8x128xf32> to vector<8x1x128xf32>
    %92 = vector.shape_cast %91 : vector<8x1x128xf32> to vector<8x128xf32>
    %cst_18 = arith.constant dense<0.000000e+00> : vector<8x128xf32>
    %93 = tpu.matmul %90, %2, %cst_18 {dimension_numbers = #tpu.dot_dimension_numbers<[1], [0], [0], [1], [0, 0, 1, 1], [], []>} : vector<8x32xf32>, vector<32x128xf32>, vector<8x128xf32> -> vector<8x128xf32>
    %94 = arith.addf %92, %93 : vector<8x128xf32>
    %95 = vector.extract_strided_slice %94 {offsets = [0, 0], sizes = [8, 96], strides = [1, 1]} : vector<8x128xf32> to vector<8x96xf32>
    %96 = arith.negf %95 : vector<8x96xf32>
    %97 = math.exp %96 : vector<8x96xf32>
    %cst_19 = arith.constant 1.000000e+00 : f32
    %98 = vector.broadcast %cst_19 : f32 to vector<8x96xf32>
    %99 = arith.addf %98, %97 : vector<8x96xf32>
    %100 = arith.divf %98, %99 : vector<8x96xf32>
    %101 = vector.extract_strided_slice %94 {offsets = [0, 96], sizes = [8, 32], strides = [1, 1]} : vector<8x128xf32> to vector<8x32xf32>
    %102 = math.tanh %101 : vector<8x32xf32>
    %103 = vector.extract_strided_slice %100 {offsets = [0, 0], sizes = [8, 32], strides = [1, 1]} : vector<8x96xf32> to vector<8x32xf32>
    %104 = vector.extract_strided_slice %100 {offsets = [0, 32], sizes = [8, 32], strides = [1, 1]} : vector<8x96xf32> to vector<8x32xf32>
    %105 = vector.extract_strided_slice %100 {offsets = [0, 64], sizes = [8, 32], strides = [1, 1]} : vector<8x96xf32> to vector<8x32xf32>
    %106 = arith.mulf %104, %88 : vector<8x32xf32>
    %107 = arith.mulf %103, %102 : vector<8x32xf32>
    %108 = arith.addf %106, %107 : vector<8x32xf32>
    %109 = math.tanh %108 : vector<8x32xf32>
    %110 = arith.mulf %105, %109 : vector<8x32xf32>
    %111 = vector.extract_strided_slice %8 {offsets = [0, 5, 0], sizes = [8, 1, 128], strides = [1, 1, 1]} : vector<8x8x128xf32> to vector<8x1x128xf32>
    %112 = vector.shape_cast %111 : vector<8x1x128xf32> to vector<8x128xf32>
    %cst_20 = arith.constant dense<0.000000e+00> : vector<8x128xf32>
    %113 = tpu.matmul %110, %2, %cst_20 {dimension_numbers = #tpu.dot_dimension_numbers<[1], [0], [0], [1], [0, 0, 1, 1], [], []>} : vector<8x32xf32>, vector<32x128xf32>, vector<8x128xf32> -> vector<8x128xf32>
    %114 = arith.addf %112, %113 : vector<8x128xf32>
    %115 = vector.extract_strided_slice %114 {offsets = [0, 0], sizes = [8, 96], strides = [1, 1]} : vector<8x128xf32> to vector<8x96xf32>
    %116 = arith.negf %115 : vector<8x96xf32>
    %117 = math.exp %116 : vector<8x96xf32>
    %cst_21 = arith.constant 1.000000e+00 : f32
    %118 = vector.broadcast %cst_21 : f32 to vector<8x96xf32>
    %119 = arith.addf %118, %117 : vector<8x96xf32>
    %120 = arith.divf %118, %119 : vector<8x96xf32>
    %121 = vector.extract_strided_slice %114 {offsets = [0, 96], sizes = [8, 32], strides = [1, 1]} : vector<8x128xf32> to vector<8x32xf32>
    %122 = math.tanh %121 : vector<8x32xf32>
    %123 = vector.extract_strided_slice %120 {offsets = [0, 0], sizes = [8, 32], strides = [1, 1]} : vector<8x96xf32> to vector<8x32xf32>
    %124 = vector.extract_strided_slice %120 {offsets = [0, 32], sizes = [8, 32], strides = [1, 1]} : vector<8x96xf32> to vector<8x32xf32>
    %125 = vector.extract_strided_slice %120 {offsets = [0, 64], sizes = [8, 32], strides = [1, 1]} : vector<8x96xf32> to vector<8x32xf32>
    %126 = arith.mulf %124, %108 : vector<8x32xf32>
    %127 = arith.mulf %123, %122 : vector<8x32xf32>
    %128 = arith.addf %126, %127 : vector<8x32xf32>
    %129 = math.tanh %128 : vector<8x32xf32>
    %130 = arith.mulf %125, %129 : vector<8x32xf32>
    %131 = vector.extract_strided_slice %8 {offsets = [0, 6, 0], sizes = [8, 1, 128], strides = [1, 1, 1]} : vector<8x8x128xf32> to vector<8x1x128xf32>
    %132 = vector.shape_cast %131 : vector<8x1x128xf32> to vector<8x128xf32>
    %cst_22 = arith.constant dense<0.000000e+00> : vector<8x128xf32>
    %133 = tpu.matmul %130, %2, %cst_22 {dimension_numbers = #tpu.dot_dimension_numbers<[1], [0], [0], [1], [0, 0, 1, 1], [], []>} : vector<8x32xf32>, vector<32x128xf32>, vector<8x128xf32> -> vector<8x128xf32>
    %134 = arith.addf %132, %133 : vector<8x128xf32>
    %135 = vector.extract_strided_slice %134 {offsets = [0, 0], sizes = [8, 96], strides = [1, 1]} : vector<8x128xf32> to vector<8x96xf32>
    %136 = arith.negf %135 : vector<8x96xf32>
    %137 = math.exp %136 : vector<8x96xf32>
    %cst_23 = arith.constant 1.000000e+00 : f32
    %138 = vector.broadcast %cst_23 : f32 to vector<8x96xf32>
    %139 = arith.addf %138, %137 : vector<8x96xf32>
    %140 = arith.divf %138, %139 : vector<8x96xf32>
    %141 = vector.extract_strided_slice %134 {offsets = [0, 96], sizes = [8, 32], strides = [1, 1]} : vector<8x128xf32> to vector<8x32xf32>
    %142 = math.tanh %141 : vector<8x32xf32>
    %143 = vector.extract_strided_slice %140 {offsets = [0, 0], sizes = [8, 32], strides = [1, 1]} : vector<8x96xf32> to vector<8x32xf32>
    %144 = vector.extract_strided_slice %140 {offsets = [0, 32], sizes = [8, 32], strides = [1, 1]} : vector<8x96xf32> to vector<8x32xf32>
    %145 = vector.extract_strided_slice %140 {offsets = [0, 64], sizes = [8, 32], strides = [1, 1]} : vector<8x96xf32> to vector<8x32xf32>
    %146 = arith.mulf %144, %128 : vector<8x32xf32>
    %147 = arith.mulf %143, %142 : vector<8x32xf32>
    %148 = arith.addf %146, %147 : vector<8x32xf32>
    %149 = math.tanh %148 : vector<8x32xf32>
    %150 = arith.mulf %145, %149 : vector<8x32xf32>
    %151 = vector.extract_strided_slice %8 {offsets = [0, 7, 0], sizes = [8, 1, 128], strides = [1, 1, 1]} : vector<8x8x128xf32> to vector<8x1x128xf32>
    %152 = vector.shape_cast %151 : vector<8x1x128xf32> to vector<8x128xf32>
    %cst_24 = arith.constant dense<0.000000e+00> : vector<8x128xf32>
    %153 = tpu.matmul %150, %2, %cst_24 {dimension_numbers = #tpu.dot_dimension_numbers<[1], [0], [0], [1], [0, 0, 1, 1], [], []>} : vector<8x32xf32>, vector<32x128xf32>, vector<8x128xf32> -> vector<8x128xf32>
    %154 = arith.addf %152, %153 : vector<8x128xf32>
    %155 = vector.extract_strided_slice %154 {offsets = [0, 0], sizes = [8, 96], strides = [1, 1]} : vector<8x128xf32> to vector<8x96xf32>
    %156 = arith.negf %155 : vector<8x96xf32>
    %157 = math.exp %156 : vector<8x96xf32>
    %cst_25 = arith.constant 1.000000e+00 : f32
    %158 = vector.broadcast %cst_25 : f32 to vector<8x96xf32>
    %159 = arith.addf %158, %157 : vector<8x96xf32>
    %160 = arith.divf %158, %159 : vector<8x96xf32>
    %161 = vector.extract_strided_slice %154 {offsets = [0, 96], sizes = [8, 32], strides = [1, 1]} : vector<8x128xf32> to vector<8x32xf32>
    %162 = math.tanh %161 : vector<8x32xf32>
    %163 = vector.extract_strided_slice %160 {offsets = [0, 0], sizes = [8, 32], strides = [1, 1]} : vector<8x96xf32> to vector<8x32xf32>
    %164 = vector.extract_strided_slice %160 {offsets = [0, 32], sizes = [8, 32], strides = [1, 1]} : vector<8x96xf32> to vector<8x32xf32>
    %165 = vector.extract_strided_slice %160 {offsets = [0, 64], sizes = [8, 32], strides = [1, 1]} : vector<8x96xf32> to vector<8x32xf32>
    %166 = arith.mulf %164, %148 : vector<8x32xf32>
    %167 = arith.mulf %163, %162 : vector<8x32xf32>
    %168 = arith.addf %166, %167 : vector<8x32xf32>
    %169 = math.tanh %168 : vector<8x32xf32>
    %170 = arith.mulf %165, %169 : vector<8x32xf32>
    %c0_26 = arith.constant 0 : index
    %c0_27 = arith.constant 0 : index
    %171 = vector.load %arg4[%c0_26, %c0_27] : memref<32x32xf32, #tpu.memory_space<vmem>>, vector<32x32xf32>
    %c0_28 = arith.constant 0 : index
    %c0_29 = arith.constant 0 : index
    %172 = vector.load %arg5[%c0_28, %c0_29] : memref<1x32xf32, #tpu.memory_space<vmem>>, vector<1x32xf32>
    %cst_30 = arith.constant dense<0.000000e+00> : vector<8x32xf32>
    %173 = tpu.matmul %170, %171, %cst_30 {dimension_numbers = #tpu.dot_dimension_numbers<[1], [0], [0], [1], [0, 0, 1, 1], [], []>} : vector<8x32xf32>, vector<32x32xf32>, vector<8x32xf32> -> vector<8x32xf32>
    %174 = vector.broadcast %172 : vector<1x32xf32> to vector<8x32xf32>
    %175 = arith.addf %173, %174 : vector<8x32xf32>
    %cst_31 = arith.constant 0.000000e+00 : f32
    %176 = vector.broadcast %cst_31 : f32 to vector<8x32xf32>
    %177 = arith.maximumf %175, %176 : vector<8x32xf32>
    %c0_32 = arith.constant 0 : index
    %c0_33 = arith.constant 0 : index
    %178 = vector.load %arg6[%c0_32, %c0_33] : memref<32x128xf32, #tpu.memory_space<vmem>>, vector<32x128xf32>
    %cst_34 = arith.constant dense<0.000000e+00> : vector<8x128xf32>
    %179 = tpu.matmul %177, %178, %cst_34 {dimension_numbers = #tpu.dot_dimension_numbers<[1], [0], [0], [1], [0, 0, 1, 1], [], []>} : vector<8x32xf32>, vector<32x128xf32>, vector<8x128xf32> -> vector<8x128xf32>
    %c0_35 = arith.constant 0 : index
    %c0_36 = arith.constant 0 : index
    %180 = vector.load %arg7[%c0_35, %c0_36] : memref<1x128xf32, #tpu.memory_space<vmem>>, vector<1x128xf32>
    %181 = vector.broadcast %180 : vector<1x128xf32> to vector<8x128xf32>
    %182 = arith.addf %179, %181 : vector<8x128xf32>
    %c0_37 = arith.constant 0 : index
    %c0_38 = arith.constant 0 : index
    %183 = vector.load %arg8[%c0_37, %c0_38] : memref<8x128xf32, #tpu.memory_space<vmem>>, vector<8x128xf32>
    tpu.vector_store %arg8[%c0_37, %c0_38], %182 {strides = array<i32>} : memref<8x128xf32, #tpu.memory_space<vmem>>, vector<8x128xf32>,
    return
  }
}

</mosaic_0001>

<llo_original>
// kernel: tpu_custom_call.1
$region0: #{tpu_custom_call.1}
  #allocation0 [shape = 'u32[]', space=smem, size = 0x4, offset = 0x4, fixed_abs, tag = 'smem constant byte address 0x4 - core index']
  #allocation1 [shape = 'u32[72,128]{1,0:T(1,128)}', space=vmem, size = 0x9000, scoped, tag = 'internal scratch']
  %s0 = inlined_call_operand.hbm [shape: f32[8,8,16], index: 0, kind: input, shape index: {}]
  %s1 = inlined_call_operand.hbm [shape: f32[16,128], index: 1, kind: input, shape index: {}]
  %s2 = inlined_call_operand.hbm [shape: f32[32,128], index: 2, kind: input, shape index: {}]
  %s3 = inlined_call_operand.vmem [shape: f32[1,128], index: 3, kind: input, shape index: {}]
  %s4 = inlined_call_operand.hbm [shape: f32[32,32], index: 4, kind: input, shape index: {}]
  %s5 = inlined_call_operand.vmem [shape: f32[1,32], index: 5, kind: input, shape index: {}]
  %s6 = inlined_call_operand.hbm [shape: f32[32,128], index: 6, kind: input, shape index: {}]
  %s7 = inlined_call_operand.vmem [shape: f32[1,128], index: 7, kind: input, shape index: {}]
  %s8 = inlined_call_operand.hbm [shape: f32[8,128], index: 8, kind: output, shape index: {}]
  %s9 = sld [smem:[#allocation0]]
  $region62: #{tpu_custom_call.1} parent=0
    _
  %s11 = ssub.s32 1, %s9
  %s12 = scalar_select 0, %s11, %s9
  $region1: #{tpu_custom_call.1} parent=0
    #allocation2 [shape = 'u8[32768]{0}', space=vmem, size = 0x8000, scoped, tag = 'input window, operand 0, single buffered']
    #allocation3 [shape = 's32[1]{0}', space=sflag, size = 0x4, scoped, tag = 'scoped memory for tpu_custom_call.1']
    #allocation4 [shape = 's32[1]{0}', space=sflag, size = 0x4, scoped, tag = 'scoped memory for tpu_custom_call.1']
    #allocation5 [shape = 'u8[8192]{0}', space=vmem, size = 0x2000, scoped, tag = 'input window, operand 1, single buffered']
    #allocation6 [shape = 's32[1]{0}', space=sflag, size = 0x4, scoped, tag = 'scoped memory for tpu_custom_call.1']
    #allocation7 [shape = 'u8[16384]{0}', space=vmem, size = 0x4000, scoped, tag = 'input window, operand 2, single buffered']
    #allocation8 [shape = 'u8[16384]{0}', space=vmem, size = 0x4000, scoped, tag = 'input window, operand 4, single buffered']
    #allocation9 [shape = 's32[1]{0}', space=sflag, size = 0x4, scoped, tag = 'scoped memory for tpu_custom_call.1']
    #allocation10 [shape = 'u8[16384]{0}', space=vmem, size = 0x4000, scoped, tag = 'input window, operand 6, single buffered']
    #allocation11 [shape = 'u8[4096]{0}', space=vmem, size = 0x1000, scoped, tag = 'output window, operand 0, single buffered']
    %13 = vsyncpa [#allocation3], 0
    %14 = vsyncpa [#allocation6], 0
    %15 = vsyncpa [#allocation9], 0
    %16 = vsyncpa [#allocation4], 0
    // Predicated region
    $region2: #{tpu_custom_call.1} parent=1 // pred_check
      _
    $region3: #{tpu_custom_call.1} parent=1 // pred_check_branch
      %18 = sbr.rel (0) target = $region5
    $region4: #{tpu_custom_call.1} parent=1 // pred_region
      %20 = vsyncadd [#allocation3], 0
      %s21 = sshll.u32 %s0, 4
      %s22 = int_to_ptr.hbm [resolvable:$true] %s21
      %s23 = sshll.u32 [#allocation2], 4
      %s24 = int_to_ptr.vmem [resolvable:$true] %s23
      %29 = dma.hbm_to_vmem [thread:$0]  %s22, 1024, %s24, [#allocation3], 128, 128, 8
    $region5: #{tpu_custom_call.1} parent=1 // pred_fallthru
      _
    // Predicated region
    $region6: #{tpu_custom_call.1} parent=1 // pred_check
      _
    $region7: #{tpu_custom_call.1} parent=1 // pred_check_branch
      %31 = sbr.rel (0) target = $region9
    $region8: #{tpu_custom_call.1} parent=1 // pred_region
      %33 = vsyncadd [#allocation6], 0
      %s34 = sshll.u32 %s1, 4
      %s35 = int_to_ptr.hbm [resolvable:$true] %s34
      %s36 = sshll.u32 [#allocation5], 4
      %s37 = int_to_ptr.vmem [resolvable:$true] %s36
      %42 = dma.hbm_to_vmem [thread:$0]  %s35, 256, %s37, [#allocation6], 128, 128, 8
    $region9: #{tpu_custom_call.1} parent=1 // pred_fallthru
      _
    // Predicated region
    $region10: #{tpu_custom_call.1} parent=1 // pred_check
      _
    $region11: #{tpu_custom_call.1} parent=1 // pred_check_branch
      %44 = sbr.rel (0) target = $region13
    $region12: #{tpu_custom_call.1} parent=1 // pred_region
      %46 = vsyncadd [#allocation6], 0
      %s47 = sshll.u32 %s2, 4
      %s48 = int_to_ptr.hbm [resolvable:$true] %s47
      %s49 = sshll.u32 [#allocation7], 4
      %s50 = int_to_ptr.vmem [resolvable:$true] %s49
      %55 = dma.hbm_to_vmem [thread:$0]  %s48, 512, %s50, [#allocation6], 128, 128, 8
    $region13: #{tpu_custom_call.1} parent=1 // pred_fallthru
      _
    // Predicated region
    $region14: #{tpu_custom_call.1} parent=1 // pred_check
      _
    $region15: #{tpu_custom_call.1} parent=1 // pred_check_branch
      %57 = sbr.rel (0) target = $region17
    $region16: #{tpu_custom_call.1} parent=1 // pred_region
      _
    $region17: #{tpu_custom_call.1} parent=1 // pred_fallthru
      _
    // Predicated region
    $region18: #{tpu_custom_call.1} parent=1 // pred_check
      _
    $region19: #{tpu_custom_call.1} parent=1 // pred_check_branch
      %59 = sbr.rel (0) target = $region21
    $region20: #{tpu_custom_call.1} parent=1 // pred_region
      %61 = vsyncadd [#allocation9], 0
      %s62 = sshll.u32 %s4, 4
      %s63 = int_to_ptr.hbm [resolvable:$true] %s62
      %s64 = sshll.u32 [#allocation8], 4
      %s65 = int_to_ptr.vmem [resolvable:$true] %s64
      %70 = dma.hbm_to_vmem [thread:$0]  %s63, 512, %s65, [#allocation9], 128, 128, 8
    $region21: #{tpu_custom_call.1} parent=1 // pred_fallthru
      _
    // Predicated region
    $region22: #{tpu_custom_call.1} parent=1 // pred_check
      _
    $region23: #{tpu_custom_call.1} parent=1 // pred_check_branch
      %72 = sbr.rel (0) target = $region25
    $region24: #{tpu_custom_call.1} parent=1 // pred_region
      _
    $region25: #{tpu_custom_call.1} parent=1 // pred_fallthru
      _
    // Predicated region
    $region26: #{tpu_custom_call.1} parent=1 // pred_check
      _
    $region27: #{tpu_custom_call.1} parent=1 // pred_check_branch
      %74 = sbr.rel (0) target = $region29
    $region28: #{tpu_custom_call.1} parent=1 // pred_region
      %76 = vsyncadd [#allocation9], 0
      %s77 = sshll.u32 %s6, 4
      %s78 = int_to_ptr.hbm [resolvable:$true] %s77
      %s79 = sshll.u32 [#allocation10], 4
      %s80 = int_to_ptr.vmem [resolvable:$true] %s79
      %85 = dma.hbm_to_vmem [thread:$0]  %s78, 512, %s80, [#allocation9], 128, 128, 8
    $region29: #{tpu_custom_call.1} parent=1 // pred_fallthru
      _
    // Predicated region
    $region30: #{tpu_custom_call.1} parent=1 // pred_check
      _
    $region31: #{tpu_custom_call.1} parent=1 // pred_check_branch
      %87 = sbr.rel (0) target = $region33
    $region32: #{tpu_custom_call.1} parent=1 // pred_region
      _
    $region33: #{tpu_custom_call.1} parent=1 // pred_fallthru
      _
    // Predicated region
    $region34: #{tpu_custom_call.1} parent=1 // pred_check
      _
    $region35: #{tpu_custom_call.1} parent=1 // pred_check_branch
      %89 = sbr.rel (0) target = $region37
    $region36: #{tpu_custom_call.1} parent=1 // pred_region
      %91 = dma.done [#allocation3], 1024
    $region37: #{tpu_custom_call.1} parent=1 // pred_fallthru
      _
    // Predicated region
    $region38: #{tpu_custom_call.1} parent=1 // pred_check
      _
    $region39: #{tpu_custom_call.1} parent=1 // pred_check_branch
      %93 = sbr.rel (0) target = $region41
    $region40: #{tpu_custom_call.1} parent=1 // pred_region
      %95 = dma.done [#allocation6], 256
    $region41: #{tpu_custom_call.1} parent=1 // pred_fallthru
      _
    // Predicated region
    $region42: #{tpu_custom_call.1} parent=1 // pred_check
      _
    $region43: #{tpu_custom_call.1} parent=1 // pred_check_branch
      %97 = sbr.rel (0) target = $region45
    $region44: #{tpu_custom_call.1} parent=1 // pred_region
      %99 = dma.done [#allocation6], 512
    $region45: #{tpu_custom_call.1} parent=1 // pred_fallthru
      _
    // Predicated region
    $region46: #{tpu_custom_call.1} parent=1 // pred_check
      _
    $region47: #{tpu_custom_call.1} parent=1 // pred_check_branch
      %101 = sbr.rel (0) target = $region49
    $region48: #{tpu_custom_call.1} parent=1 // pred_region
      %103 = dma.done [#allocation9], 512
    $region49: #{tpu_custom_call.1} parent=1 // pred_fallthru
      _
    // Predicated region
    $region50: #{tpu_custom_call.1} parent=1 // pred_check
      _
    $region51: #{tpu_custom_call.1} parent=1 // pred_check_branch
      %105 = sbr.rel (0) target = $region53
    $region52: #{tpu_custom_call.1} parent=1 // pred_region
      %107 = dma.done [#allocation9], 512
    $region53: #{tpu_custom_call.1} parent=1 // pred_fallthru
      _
    %v108 = vld [vmem:[#allocation2] sm:$0xff]
    %v109 = vld [vmem:[#allocation2 + $0x8] sm:$0xff]
    %v110 = vld [vmem:[#allocation2 + $0x10] sm:$0xff]
    %v111 = vld [vmem:[#allocation2 + $0x18] sm:$0xff]
    %v112 = vld [vmem:[#allocation2 + $0x20] sm:$0xff]
    %v113 = vld [vmem:[#allocation2 + $0x28] sm:$0xff]
    %v114 = vld [vmem:[#allocation2 + $0x30] sm:$0xff]
    %v115 = vld [vmem:[#allocation2 + $0x38] sm:$0xff]
    %v116 = vld [vmem:[#allocation5] sm:$0xff]
    %v117 = vld [vmem:[#allocation5 + $0x8] sm:$0xff]
    %v118 = vld [vmem:[#allocation7] sm:$0xff]
    %v119 = vld [vmem:[#allocation7 + $0x8] sm:$0xff]
    %v120 = vld [vmem:[#allocation7 + $0x10] sm:$0xff]
    %v121 = vld [vmem:[#allocation7 + $0x18] sm:$0xff]
    %v122 = vld [vmem:[%s3] sm:$0x1]
    %v124 = vperm.slane %v122, 0
    %vm126 = vcmask 130048
    %v128 = vsel %vm126, %v108, 0
    %v131 = vsel %vm126, %v109, 0
    %v134 = vsel %vm126, %v110, 0
    %v137 = vsel %vm126, %v111, 0
    %v140 = vsel %vm126, %v112, 0
    %v143 = vsel %vm126, %v113, 0
    %v146 = vsel %vm126, %v114, 0
    %v149 = vsel %vm126, %v115, 0
    %151 = vmatpush.msra.mxu0 0.0
    %152 = vmatpush.msra.mxu0 0.0
    %153 = vmatpush.msra.mxu0 0.0
    %154 = vmatpush.msra.mxu0 0.0
    %155 = vmatpush.msra.mxu0 0.0
    %156 = vmatpush.msra.mxu0 0.0
    %157 = vmatpush.msra.mxu0 0.0
    %158 = vmatpush.msra.mxu0 0.0
    %159 = vmatpush.msra.mxu0 0.0
    %160 = vmatpush.msra.mxu0 0.0
    %161 = vmatpush.msra.mxu0 0.0
    %162 = vmatpush.msra.mxu0 0.0
    %163 = vmatpush.msra.mxu0 0.0
    %164 = vmatpush.msra.mxu0 0.0
    %165 = vmatpush.msra.mxu0 %v117
    %166 = vmatpush.msra.mxu0 %v116
    %167 = vmatmul.f32.gmra.mxu0 %v128
    %v168 = vpop.f32.mrf.mxu0
    %v169 = vadd.f32 %v124, %v168
    %170 = vmatmul.f32.gmra.mxu0 %v131
    %v171 = vpop.f32.mrf.mxu0
    %v172 = vadd.f32 %v124, %v171
    %173 = vmatmul.f32.gmra.mxu0 %v134
    %v174 = vpop.f32.mrf.mxu0
    %v175 = vadd.f32 %v124, %v174
    %176 = vmatmul.f32.gmra.mxu0 %v137
    %v177 = vpop.f32.mrf.mxu0
    %v178 = vadd.f32 %v124, %v177
    %179 = vmatmul.f32.gmra.mxu0 %v140
    %v180 = vpop.f32.mrf.mxu0
    %v181 = vadd.f32 %v124, %v180
    %182 = vmatmul.f32.gmra.mxu0 %v143
    %v183 = vpop.f32.mrf.mxu0
    %v184 = vadd.f32 %v124, %v183
    %185 = vmatmul.f32.gmra.mxu0 %v146
    %v186 = vpop.f32.mrf.mxu0
    %v187 = vadd.f32 %v124, %v186
    %188 = vmatmul.f32.gmra.mxu0 %v149
    %v189 = vpop.f32.mrf.mxu0
    %v190 = vadd.f32 %v124, %v189
    %191 = vdwg.mxu0
    %vm192 = vcmask 261120
    %v194 = vsel %vm192, 0.0, 0
    %196 = vmatpush.msra.mxu0 0.0
    %197 = vmatpush.msra.mxu0 0.0
    %198 = vmatpush.msra.mxu0 0.0
    %199 = vmatpush.msra.mxu0 0.0
    %200 = vmatpush.msra.mxu0 0.0
    %201 = vmatpush.msra.mxu0 0.0
    %202 = vmatpush.msra.mxu0 0.0
    %203 = vmatpush.msra.mxu0 0.0
    %204 = vmatpush.msra.mxu0 0.0
    %205 = vmatpush.msra.mxu0 0.0
    %206 = vmatpush.msra.mxu0 0.0
    %207 = vmatpush.msra.mxu0 0.0
    %208 = vmatpush.msra.mxu0 %v121
    %209 = vmatpush.msra.mxu0 %v120
    %210 = vmatpush.msra.mxu0 %v119
    %211 = vmatpush.msra.mxu0 %v118
    %212 = vmatmul.f32.gmra.mxu0 %v194
    %v213 = vpop.f32.mrf.mxu0
    %v214 = vadd.f32 0.0, %v213
    %215 = vdwg.mxu0
    %v217 = vrot.slane %v214, 1
    %v218 = vrot.slane %v214, 2
    %v219 = vrot.slane %v214, 3
    %v220 = vrot.slane %v214, 4
    %v221 = vrot.slane %v214, 5
    %v222 = vrot.slane %v214, 6
    %v223 = vrot.slane %v214, 7
    %v232 = vadd.f32 %v169, %v214
    %v233 = vadd.f32 %v172, %v217
    %v234 = vadd.f32 %v175, %v218
    %v235 = vadd.f32 %v178, %v219
    %v236 = vadd.f32 %v181, %v220
    %v237 = vadd.f32 %v184, %v221
    %v238 = vadd.f32 %v187, %v222
    %v239 = vadd.f32 %v190, %v223
    %v240 = vxor.u32 %v232, 2147483648
    %v241 = vxor.u32 %v233, 2147483648
    %v242 = vxor.u32 %v234, 2147483648
    %v243 = vxor.u32 %v235, 2147483648
    %v244 = vxor.u32 %v236, 2147483648
    %v245 = vxor.u32 %v237, 2147483648
    %v246 = vxor.u32 %v238, 2147483648
    %v247 = vxor.u32 %v239, 2147483648
    %v248 = vmul.f32 %v240, 1.442695
    %v249 = vpow.pop %v248
    %v250 = vmul.f32 %v241, 1.442695
    %v251 = vpow.pop %v250
    %v252 = vmul.f32 %v242, 1.442695
    %v253 = vpow.pop %v252
    %v254 = vmul.f32 %v243, 1.442695
    %v255 = vpow.pop %v254
    %v256 = vmul.f32 %v244, 1.442695
    %v257 = vpow.pop %v256
    %v258 = vmul.f32 %v245, 1.442695
    %v259 = vpow.pop %v258
    %v260 = vmul.f32 %v246, 1.442695
    %v261 = vpow.pop %v260
    %v262 = vmul.f32 %v247, 1.442695
    %v263 = vpow.pop %v262
    %v264 = vadd.f32 %v249, 1.0
    %v265 = vadd.f32 %v251, 1.0
    %v266 = vadd.f32 %v253, 1.0
    %v267 = vadd.f32 %v255, 1.0
    %v268 = vadd.f32 %v257, 1.0
    %v269 = vadd.f32 %v259, 1.0
    %v270 = vadd.f32 %v261, 1.0
    %v271 = vadd.f32 %v263, 1.0
    %v272 = vrcp.pop %v264
    %v273 = vmul.f32 %v264, %v272
    %v274 = vsub.f32 1.0, %v273
    %v275 = vmul.f32 %v272, %v274
    %v276 = vadd.f32 %v272, %v275
    %vm277 = vweird.f32 %v264
    %vm278 = vweird.f32 %v272
    %vm279 = vmor %vm277, %vm278
    %v280 = vsel %vm279, %v272, %v276
    %v281 = vand.u32 2147483647, %v264
    %vm282 = vcmp.eq.f32.partialorder %v281, 8.507059e+37
    %v283 = vand.u32 %v264, 2147483648
    %v284 = vor.u32 1.1754944e-38, %v283
    %v285 = vsel %vm282, %v284, %v280
    %v286 = vmul.f32 1.0, %v285
    %v287 = vrcp.pop %v265
    %v288 = vmul.f32 %v265, %v287
    %v289 = vsub.f32 1.0, %v288
    %v290 = vmul.f32 %v287, %v289
    %v291 = vadd.f32 %v287, %v290
    %vm292 = vweird.f32 %v265
    %vm293 = vweird.f32 %v287
    %vm294 = vmor %vm292, %vm293
    %v295 = vsel %vm294, %v287, %v291
    %v296 = vand.u32 2147483647, %v265
    %vm297 = vcmp.eq.f32.partialorder %v296, 8.507059e+37
    %v298 = vand.u32 %v265, 2147483648
    %v299 = vor.u32 1.1754944e-38, %v298
    %v300 = vsel %vm297, %v299, %v295
    %v301 = vmul.f32 1.0, %v300
    %v302 = vrcp.pop %v266
    %v303 = vmul.f32 %v266, %v302
    %v304 = vsub.f32 1.0, %v303
    %v305 = vmul.f32 %v302, %v304
    %v306 = vadd.f32 %v302, %v305
    %vm307 = vweird.f32 %v266
    %vm308 = vweird.f32 %v302
    %vm309 = vmor %vm307, %vm308
    %v310 = vsel %vm309, %v302, %v306
    %v311 = vand.u32 2147483647, %v266
    %vm312 = vcmp.eq.f32.partialorder %v311, 8.507059e+37
    %v313 = vand.u32 %v266, 2147483648
    %v314 = vor.u32 1.1754944e-38, %v313
    %v315 = vsel %vm312, %v314, %v310
    %v316 = vmul.f32 1.0, %v315
    %v317 = vrcp.pop %v267
    %v318 = vmul.f32 %v267, %v317
    %v319 = vsub.f32 1.0, %v318
    %v320 = vmul.f32 %v317, %v319
    %v321 = vadd.f32 %v317, %v320
    %vm322 = vweird.f32 %v267
    %vm323 = vweird.f32 %v317
    %vm324 = vmor %vm322, %vm323
    %v325 = vsel %vm324, %v317, %v321
    %v326 = vand.u32 2147483647, %v267
    %vm327 = vcmp.eq.f32.partialorder %v326, 8.507059e+37
    %v328 = vand.u32 %v267, 2147483648
    %v329 = vor.u32 1.1754944e-38, %v328
    %v330 = vsel %vm327, %v329, %v325
    %v331 = vmul.f32 1.0, %v330
    %v332 = vrcp.pop %v268
    %v333 = vmul.f32 %v268, %v332
    %v334 = vsub.f32 1.0, %v333
    %v335 = vmul.f32 %v332, %v334
    %v336 = vadd.f32 %v332, %v335
    %vm337 = vweird.f32 %v268
    %vm338 = vweird.f32 %v332
    %vm339 = vmor %vm337, %vm338
    %v340 = vsel %vm339, %v332, %v336
    %v341 = vand.u32 2147483647, %v268
    %vm342 = vcmp.eq.f32.partialorder %v341, 8.507059e+37
    %v343 = vand.u32 %v268, 2147483648
    %v344 = vor.u32 1.1754944e-38, %v343
    %v345 = vsel %vm342, %v344, %v340
    %v346 = vmul.f32 1.0, %v345
    %v347 = vrcp.pop %v269
    %v348 = vmul.f32 %v269, %v347
    %v349 = vsub.f32 1.0, %v348
    %v350 = vmul.f32 %v347, %v349
    %v351 = vadd.f32 %v347, %v350
    %vm352 = vweird.f32 %v269
    %vm353 = vweird.f32 %v347
    %vm354 = vmor %vm352, %vm353
    %v355 = vsel %vm354, %v347, %v351
    %v356 = vand.u32 2147483647, %v269
    %vm357 = vcmp.eq.f32.partialorder %v356, 8.507059e+37
    %v358 = vand.u32 %v269, 2147483648
    %v359 = vor.u32 1.1754944e-38, %v358
    %v360 = vsel %vm357, %v359, %v355
    %v361 = vmul.f32 1.0, %v360
    %v362 = vrcp.pop %v270
    %v363 = vmul.f32 %v270, %v362
    %v364 = vsub.f32 1.0, %v363
    %v365 = vmul.f32 %v362, %v364
    %v366 = vadd.f32 %v362, %v365
    %vm367 = vweird.f32 %v270
    %vm368 = vweird.f32 %v362
    %vm369 = vmor %vm367, %vm368
    %v370 = vsel %vm369, %v362, %v366
    %v371 = vand.u32 2147483647, %v270
    %vm372 = vcmp.eq.f32.partialorder %v371, 8.507059e+37
    %v373 = vand.u32 %v270, 2147483648
    %v374 = vor.u32 1.1754944e-38, %v373
    %v375 = vsel %vm372, %v374, %v370
    %v376 = vmul.f32 1.0, %v375
    %v377 = vrcp.pop %v271
    %v378 = vmul.f32 %v271, %v377
    %v379 = vsub.f32 1.0, %v378
    %v380 = vmul.f32 %v377, %v379
    %v381 = vadd.f32 %v377, %v380
    %vm382 = vweird.f32 %v271
    %vm383 = vweird.f32 %v377
    %vm384 = vmor %vm382, %vm383
    %v385 = vsel %vm384, %v377, %v381
    %v386 = vand.u32 2147483647, %v271
    %vm387 = vcmp.eq.f32.partialorder %v386, 8.507059e+37
    %v388 = vand.u32 %v271, 2147483648
    %v389 = vor.u32 1.1754944e-38, %v388
    %v390 = vsel %vm387, %v389, %v385
    %v391 = vmul.f32 1.0, %v390
    %v392 = vtanh.pop %v232
    %v393 = vtanh.pop %v233
    %v394 = vtanh.pop %v234
    %v395 = vtanh.pop %v235
    %v396 = vtanh.pop %v236
    %v397 = vtanh.pop %v237
    %v398 = vtanh.pop %v238
    %v399 = vtanh.pop %v239
    %v400 = vmul.f32 %v286, 0.0
    %v401 = vmul.f32 %v301, 0.0
    %v402 = vmul.f32 %v316, 0.0
    %v403 = vmul.f32 %v331, 0.0
    %v404 = vmul.f32 %v346, 0.0
    %v405 = vmul.f32 %v361, 0.0
    %v406 = vmul.f32 %v376, 0.0
    %v407 = vmul.f32 %v391, 0.0
    %416 = vrot.lane.b32.xlu0 %v392, 32
    %v417 = vpop.permute.xlu0 %416
    %418 = vrot.lane.b32.xlu0 %v393, 32
    %v419 = vpop.permute.xlu0 %418
    %420 = vrot.lane.b32.xlu0 %v394, 32
    %v421 = vpop.permute.xlu0 %420
    %422 = vrot.lane.b32.xlu0 %v395, 32
    %v423 = vpop.permute.xlu0 %422
    %424 = vrot.lane.b32.xlu0 %v396, 32
    %v425 = vpop.permute.xlu0 %424
    %426 = vrot.lane.b32.xlu0 %v397, 32
    %v427 = vpop.permute.xlu0 %426
    %428 = vrot.lane.b32.xlu0 %v398, 32
    %v429 = vpop.permute.xlu0 %428
    %430 = vrot.lane.b32.xlu0 %v399, 32
    %v431 = vpop.permute.xlu0 %430
    %v440 = vmul.f32 %v286, %v417
    %v441 = vmul.f32 %v301, %v419
    %v442 = vmul.f32 %v316, %v421
    %v443 = vmul.f32 %v331, %v423
    %v444 = vmul.f32 %v346, %v425
    %v445 = vmul.f32 %v361, %v427
    %v446 = vmul.f32 %v376, %v429
    %v447 = vmul.f32 %v391, %v431
    %456 = vrot.lane.b32.xlu0 %v440, 32
    %v457 = vpop.permute.xlu0 %456
    %458 = vrot.lane.b32.xlu0 %v441, 32
    %v459 = vpop.permute.xlu0 %458
    %460 = vrot.lane.b32.xlu0 %v442, 32
    %v461 = vpop.permute.xlu0 %460
    %462 = vrot.lane.b32.xlu0 %v443, 32
    %v463 = vpop.permute.xlu0 %462
    %464 = vrot.lane.b32.xlu0 %v444, 32
    %v465 = vpop.permute.xlu0 %464
    %466 = vrot.lane.b32.xlu0 %v445, 32
    %v467 = vpop.permute.xlu0 %466
    %468 = vrot.lane.b32.xlu0 %v446, 32
    %v469 = vpop.permute.xlu0 %468
    %470 = vrot.lane.b32.xlu0 %v447, 32
    %v471 = vpop.permute.xlu0 %470
    %v480 = vadd.f32 %v400, %v457
    %v481 = vadd.f32 %v401, %v459
    %v482 = vadd.f32 %v402, %v461
    %v483 = vadd.f32 %v403, %v463
    %v484 = vadd.f32 %v404, %v465
    %v485 = vadd.f32 %v405, %v467
    %v486 = vadd.f32 %v406, %v469
    %v487 = vadd.f32 %v407, %v471
    %v488 = vtanh.pop %v480
    %v489 = vtanh.pop %v481
    %v490 = vtanh.pop %v482
    %v491 = vtanh.pop %v483
    %v492 = vtanh.pop %v484
    %v493 = vtanh.pop %v485
    %v494 = vtanh.pop %v486
    %v495 = vtanh.pop %v487
    %504 = vrot.lane.b32.xlu0 %v488, 32
    %v505 = vpop.permute.xlu0 %504
    %506 = vrot.lane.b32.xlu0 %v489, 32
    %v507 = vpop.permute.xlu0 %506
    %508 = vrot.lane.b32.xlu0 %v490, 32
    %v509 = vpop.permute.xlu0 %508
    %510 = vrot.lane.b32.xlu0 %v491, 32
    %v511 = vpop.permute.xlu0 %510
    %512 = vrot.lane.b32.xlu0 %v492, 32
    %v513 = vpop.permute.xlu0 %512
    %514 = vrot.lane.b32.xlu0 %v493, 32
    %v515 = vpop.permute.xlu0 %514
    %516 = vrot.lane.b32.xlu0 %v494, 32
    %v517 = vpop.permute.xlu0 %516
    %518 = vrot.lane.b32.xlu0 %v495, 32
    %v519 = vpop.permute.xlu0 %518
    %v528 = vmul.f32 %v286, %v505
    %v529 = vmul.f32 %v301, %v507
    %v530 = vmul.f32 %v316, %v509
    %v531 = vmul.f32 %v331, %v511
    %v532 = vmul.f32 %v346, %v513
    %v533 = vmul.f32 %v361, %v515
    %v534 = vmul.f32 %v376, %v517
    %v535 = vmul.f32 %v391, %v519
    %v544 = vrot.slane %v529, 7
    %vm545 = vcmask 1041409
    %v546 = vsel %vm545, %v544, %v528
    %v547 = vrot.slane %v530, 6
    %vm548 = vcmask 1042434
    %v549 = vsel %vm548, %v547, %v546
    %v550 = vrot.slane %v531, 5
    %vm551 = vcmask 1043459
    %v552 = vsel %vm551, %v550, %v549
    %v553 = vrot.slane %v532, 4
    %vm554 = vcmask 1044484
    %v555 = vsel %vm554, %v553, %v552
    %v556 = vrot.slane %v533, 3
    %vm557 = vcmask 1045509
    %v558 = vsel %vm557, %v556, %v555
    %v559 = vrot.slane %v534, 2
    %vm560 = vcmask 1046534
    %v561 = vsel %vm560, %v559, %v558
    %v562 = vrot.slane %v535, 1
    %vm563 = vcmask 1047559
    %v564 = vsel %vm563, %v562, %v561
    %565 = vrot.lane.b32.xlu0 %v564, 64
    %v566 = vpop.permute.xlu0 %565
    %v567 = vsel %vm192, %v566, 0
    %569 = vmatpush.msra.mxu0 0.0
    %570 = vmatpush.msra.mxu0 0.0
    %571 = vmatpush.msra.mxu0 0.0
    %572 = vmatpush.msra.mxu0 0.0
    %573 = vmatpush.msra.mxu0 0.0
    %574 = vmatpush.msra.mxu0 0.0
    %575 = vmatpush.msra.mxu0 0.0
    %576 = vmatpush.msra.mxu0 0.0
    %577 = vmatpush.msra.mxu0 0.0
    %578 = vmatpush.msra.mxu0 0.0
    %579 = vmatpush.msra.mxu0 0.0
    %580 = vmatpush.msra.mxu0 0.0
    %581 = vmatpush.msra.mxu0 %v121
    %582 = vmatpush.msra.mxu0 %v120
    %583 = vmatpush.msra.mxu0 %v119
    %584 = vmatpush.msra.mxu0 %v118
    %585 = vmatmul.f32.gmra.mxu0 %v567
    %v586 = vpop.f32.mrf.mxu0
    %v587 = vadd.f32 0.0, %v586
    %588 = vdwg.mxu0
    %v590 = vrot.slane %v587, 7
    %v591 = vrot.slane %v587, 1
    %v592 = vrot.slane %v587, 2
    %v593 = vrot.slane %v587, 3
    %v594 = vrot.slane %v587, 4
    %v595 = vrot.slane %v587, 5
    %v596 = vrot.slane %v587, 6
    %v605 = vadd.f32 %v169, %v590
    %v606 = vadd.f32 %v172, %v587
    %v607 = vadd.f32 %v175, %v591
    %v608 = vadd.f32 %v178, %v592
    %v609 = vadd.f32 %v181, %v593
    %v610 = vadd.f32 %v184, %v594
    %v611 = vadd.f32 %v187, %v595
    %v612 = vadd.f32 %v190, %v596
    %v613 = vxor.u32 %v605, 2147483648
    %v614 = vxor.u32 %v606, 2147483648
    %v615 = vxor.u32 %v607, 2147483648
    %v616 = vxor.u32 %v608, 2147483648
    %v617 = vxor.u32 %v609, 2147483648
    %v618 = vxor.u32 %v610, 2147483648
    %v619 = vxor.u32 %v611, 2147483648
    %v620 = vxor.u32 %v612, 2147483648
    %v621 = vmul.f32 %v613, 1.442695
    %v622 = vpow.pop %v621
    %v623 = vmul.f32 %v614, 1.442695
    %v624 = vpow.pop %v623
    %v625 = vmul.f32 %v615, 1.442695
    %v626 = vpow.pop %v625
    %v627 = vmul.f32 %v616, 1.442695
    %v628 = vpow.pop %v627
    %v629 = vmul.f32 %v617, 1.442695
    %v630 = vpow.pop %v629
    %v631 = vmul.f32 %v618, 1.442695
    %v632 = vpow.pop %v631
    %v633 = vmul.f32 %v619, 1.442695
    %v634 = vpow.pop %v633
    %v635 = vmul.f32 %v620, 1.442695
    %v636 = vpow.pop %v635
    %v637 = vadd.f32 %v622, 1.0
    %v638 = vadd.f32 %v624, 1.0
    %v639 = vadd.f32 %v626, 1.0
    %v640 = vadd.f32 %v628, 1.0
    %v641 = vadd.f32 %v630, 1.0
    %v642 = vadd.f32 %v632, 1.0
    %v643 = vadd.f32 %v634, 1.0
    %v644 = vadd.f32 %v636, 1.0
    %v645 = vrcp.pop %v637
    %v646 = vmul.f32 %v637, %v645
    %v647 = vsub.f32 1.0, %v646
    %v648 = vmul.f32 %v645, %v647
    %v649 = vadd.f32 %v645, %v648
    %vm650 = vweird.f32 %v637
    %vm651 = vweird.f32 %v645
    %vm652 = vmor %vm650, %vm651
    %v653 = vsel %vm652, %v645, %v649
    %v654 = vand.u32 2147483647, %v637
    %vm655 = vcmp.eq.f32.partialorder %v654, 8.507059e+37
    %v656 = vand.u32 %v637, 2147483648
    %v657 = vor.u32 1.1754944e-38, %v656
    %v658 = vsel %vm655, %v657, %v653
    %v659 = vmul.f32 1.0, %v658
    %v660 = vrcp.pop %v638
    %v661 = vmul.f32 %v638, %v660
    %v662 = vsub.f32 1.0, %v661
    %v663 = vmul.f32 %v660, %v662
    %v664 = vadd.f32 %v660, %v663
    %vm665 = vweird.f32 %v638
    %vm666 = vweird.f32 %v660
    %vm667 = vmor %vm665, %vm666
    %v668 = vsel %vm667, %v660, %v664
    %v669 = vand.u32 2147483647, %v638
    %vm670 = vcmp.eq.f32.partialorder %v669, 8.507059e+37
    %v671 = vand.u32 %v638, 2147483648
    %v672 = vor.u32 1.1754944e-38, %v671
    %v673 = vsel %vm670, %v672, %v668
    %v674 = vmul.f32 1.0, %v673
    %v675 = vrcp.pop %v639
    %v676 = vmul.f32 %v639, %v675
    %v677 = vsub.f32 1.0, %v676
    %v678 = vmul.f32 %v675, %v677
    %v679 = vadd.f32 %v675, %v678
    %vm680 = vweird.f32 %v639
    %vm681 = vweird.f32 %v675
    %vm682 = vmor %vm680, %vm681
    %v683 = vsel %vm682, %v675, %v679
    %v684 = vand.u32 2147483647, %v639
    %vm685 = vcmp.eq.f32.partialorder %v684, 8.507059e+37
    %v686 = vand.u32 %v639, 2147483648
    %v687 = vor.u32 1.1754944e-38, %v686
    %v688 = vsel %vm685, %v687, %v683
    %v689 = vmul.f32 1.0, %v688
    %v690 = vrcp.pop %v640
    %v691 = vmul.f32 %v640, %v690
    %v692 = vsub.f32 1.0, %v691
    %v693 = vmul.f32 %v690, %v692
    %v694 = vadd.f32 %v690, %v693
    %vm695 = vweird.f32 %v640
    %vm696 = vweird.f32 %v690
    %vm697 = vmor %vm695, %vm696
    %v698 = vsel %vm697, %v690, %v694
    %v699 = vand.u32 2147483647, %v640
    %vm700 = vcmp.eq.f32.partialorder %v699, 8.507059e+37
    %v701 = vand.u32 %v640, 2147483648
    %v702 = vor.u32 1.1754944e-38, %v701
    %v703 = vsel %vm700, %v702, %v698
    %v704 = vmul.f32 1.0, %v703
    %v705 = vrcp.pop %v641
    %v706 = vmul.f32 %v641, %v705
    %v707 = vsub.f32 1.0, %v706
    %v708 = vmul.f32 %v705, %v707
    %v709 = vadd.f32 %v705, %v708
    %vm710 = vweird.f32 %v641
    %vm711 = vweird.f32 %v705
    %vm712 = vmor %vm710, %vm711
    %v713 = vsel %vm712, %v705, %v709
    %v714 = vand.u32 2147483647, %v641
    %vm715 = vcmp.eq.f32.partialorder %v714, 8.507059e+37
    %v716 = vand.u32 %v641, 2147483648
    %v717 = vor.u32 1.1754944e-38, %v716
    %v718 = vsel %vm715, %v717, %v713
    %v719 = vmul.f32 1.0, %v718
    %v720 = vrcp.pop %v642
    %v721 = vmul.f32 %v642, %v720
    %v722 = vsub.f32 1.0, %v721
    %v723 = vmul.f32 %v720, %v722
    %v724 = vadd.f32 %v720, %v723
    %vm725 = vweird.f32 %v642
    %vm726 = vweird.f32 %v720
    %vm727 = vmor %vm725, %vm726
    %v728 = vsel %vm727, %v720, %v724
    %v729 = vand.u32 2147483647, %v642
    %vm730 = vcmp.eq.f32.partialorder %v729, 8.507059e+37
    %v731 = vand.u32 %v642, 2147483648
    %v732 = vor.u32 1.1754944e-38, %v731
    %v733 = vsel %vm730, %v732, %v728
    %v734 = vmul.f32 1.0, %v733
    %v735 = vrcp.pop %v643
    %v736 = vmul.f32 %v643, %v735
    %v737 = vsub.f32 1.0, %v736
    %v738 = vmul.f32 %v735, %v737
    %v739 = vadd.f32 %v735, %v738
    %vm740 = vweird.f32 %v643
    %vm741 = vweird.f32 %v735
    %vm742 = vmor %vm740, %vm741
    %v743 = vsel %vm742, %v735, %v739
    %v744 = vand.u32 2147483647, %v643
    %vm745 = vcmp.eq.f32.partialorder %v744, 8.507059e+37
    %v746 = vand.u32 %v643, 2147483648
    %v747 = vor.u32 1.1754944e-38, %v746
    %v748 = vsel %vm745, %v747, %v743
    %v749 = vmul.f32 1.0, %v748
    %v750 = vrcp.pop %v644
    %v751 = vmul.f32 %v644, %v750
    %v752 = vsub.f32 1.0, %v751
    %v753 = vmul.f32 %v750, %v752
    %v754 = vadd.f32 %v750, %v753
    %vm755 = vweird.f32 %v644
    %vm756 = vweird.f32 %v750
    %vm757 = vmor %vm755, %vm756
    %v758 = vsel %vm757, %v750, %v754
    %v759 = vand.u32 2147483647, %v644
    %vm760 = vcmp.eq.f32.partialorder %v759, 8.507059e+37
    %v761 = vand.u32 %v644, 2147483648
    %v762 = vor.u32 1.1754944e-38, %v761
    %v763 = vsel %vm760, %v762, %v758
    %v764 = vmul.f32 1.0, %v763
    %v765 = vtanh.pop %v605
    %v766 = vtanh.pop %v606
    %v767 = vtanh.pop %v607
    %v768 = vtanh.pop %v608
    %v769 = vtanh.pop %v609
    %v770 = vtanh.pop %v610
    %v771 = vtanh.pop %v611
    %v772 = vtanh.pop %v612
    %v781 = vrot.slane %v480, 7
    %v782 = vrot.slane %v481, 7
    %v783 = vrot.slane %v482, 7
    %v784 = vrot.slane %v483, 7
    %v785 = vrot.slane %v484, 7
    %v786 = vrot.slane %v485, 7
    %v787 = vrot.slane %v486, 7
    %v788 = vrot.slane %v487, 7
    %v797 = vmul.f32 %v659, %v781
    %v798 = vmul.f32 %v674, %v782
    %v799 = vmul.f32 %v689, %v783
    %v800 = vmul.f32 %v704, %v784
    %v801 = vmul.f32 %v719, %v785
    %v802 = vmul.f32 %v734, %v786
    %v803 = vmul.f32 %v749, %v787
    %v804 = vmul.f32 %v764, %v788
    %813 = vrot.lane.b32.xlu0 %v765, 32
    %v814 = vpop.permute.xlu0 %813
    %815 = vrot.lane.b32.xlu0 %v766, 32
    %v816 = vpop.permute.xlu0 %815
    %817 = vrot.lane.b32.xlu0 %v767, 32
    %v818 = vpop.permute.xlu0 %817
    %819 = vrot.lane.b32.xlu0 %v768, 32
    %v820 = vpop.permute.xlu0 %819
    %821 = vrot.lane.b32.xlu0 %v769, 32
    %v822 = vpop.permute.xlu0 %821
    %823 = vrot.lane.b32.xlu0 %v770, 32
    %v824 = vpop.permute.xlu0 %823
    %825 = vrot.lane.b32.xlu0 %v771, 32
    %v826 = vpop.permute.xlu0 %825
    %827 = vrot.lane.b32.xlu0 %v772, 32
    %v828 = vpop.permute.xlu0 %827
    %v837 = vmul.f32 %v659, %v814
    %v838 = vmul.f32 %v674, %v816
    %v839 = vmul.f32 %v689, %v818
    %v840 = vmul.f32 %v704, %v820
    %v841 = vmul.f32 %v719, %v822
    %v842 = vmul.f32 %v734, %v824
    %v843 = vmul.f32 %v749, %v826
    %v844 = vmul.f32 %v764, %v828
    %853 = vrot.lane.b32.xlu0 %v837, 32
    %v854 = vpop.permute.xlu0 %853
    %855 = vrot.lane.b32.xlu0 %v838, 32
    %v856 = vpop.permute.xlu0 %855
    %857 = vrot.lane.b32.xlu0 %v839, 32
    %v858 = vpop.permute.xlu0 %857
    %859 = vrot.lane.b32.xlu0 %v840, 32
    %v860 = vpop.permute.xlu0 %859
    %861 = vrot.lane.b32.xlu0 %v841, 32
    %v862 = vpop.permute.xlu0 %861
    %863 = vrot.lane.b32.xlu0 %v842, 32
    %v864 = vpop.permute.xlu0 %863
    %865 = vrot.lane.b32.xlu0 %v843, 32
    %v866 = vpop.permute.xlu0 %865
    %867 = vrot.lane.b32.xlu0 %v844, 32
    %v868 = vpop.permute.xlu0 %867
    %v877 = vadd.f32 %v797, %v854
    %v878 = vadd.f32 %v798, %v856
    %v879 = vadd.f32 %v799, %v858
    %v880 = vadd.f32 %v800, %v860
    %v881 = vadd.f32 %v801, %v862
    %v882 = vadd.f32 %v802, %v864
    %v883 = vadd.f32 %v803, %v866
    %v884 = vadd.f32 %v804, %v868
    %v885 = vtanh.pop %v877
    %v886 = vtanh.pop %v878
    %v887 = vtanh.pop %v879
    %v888 = vtanh.pop %v880
    %v889 = vtanh.pop %v881
    %v890 = vtanh.pop %v882
    %v891 = vtanh.pop %v883
    %v892 = vtanh.pop %v884
    %901 = vrot.lane.b32.xlu0 %v885, 32
    %v902 = vpop.permute.xlu0 %901
    %903 = vrot.lane.b32.xlu0 %v886, 32
    %v904 = vpop.permute.xlu0 %903
    %905 = vrot.lane.b32.xlu0 %v887, 32
    %v906 = vpop.permute.xlu0 %905
    %907 = vrot.lane.b32.xlu0 %v888, 32
    %v908 = vpop.permute.xlu0 %907
    %909 = vrot.lane.b32.xlu0 %v889, 32
    %v910 = vpop.permute.xlu0 %909
    %911 = vrot.lane.b32.xlu0 %v890, 32
    %v912 = vpop.permute.xlu0 %911
    %913 = vrot.lane.b32.xlu0 %v891, 32
    %v914 = vpop.permute.xlu0 %913
    %915 = vrot.lane.b32.xlu0 %v892, 32
    %v916 = vpop.permute.xlu0 %915
    %v925 = vmul.f32 %v659, %v902
    %v926 = vmul.f32 %v674, %v904
    %v927 = vmul.f32 %v689, %v906
    %v928 = vmul.f32 %v704, %v908
    %v929 = vmul.f32 %v719, %v910
    %v930 = vmul.f32 %v734, %v912
    %v931 = vmul.f32 %v749, %v914
    %v932 = vmul.f32 %v764, %v916
    %v941 = vrot.slane %v925, 1
    %v942 = vsel %vm545, %v926, %v941
    %v943 = vrot.slane %v927, 7
    %v944 = vsel %vm548, %v943, %v942
    %v945 = vrot.slane %v928, 6
    %v946 = vsel %vm551, %v945, %v944
    %v947 = vrot.slane %v929, 5
    %v948 = vsel %vm554, %v947, %v946
    %v949 = vrot.slane %v930, 4
    %v950 = vsel %vm557, %v949, %v948
    %v951 = vrot.slane %v931, 3
    %v952 = vsel %vm560, %v951, %v950
    %v953 = vrot.slane %v932, 2
    %v954 = vsel %vm563, %v953, %v952
    %955 = vrot.lane.b32.xlu0 %v954, 64
    %v956 = vpop.permute.xlu0 %955
    %v957 = vsel %vm192, %v956, 0
    %959 = vmatpush.msra.mxu0 0.0
    %960 = vmatpush.msra.mxu0 0.0
    %961 = vmatpush.msra.mxu0 0.0
    %962 = vmatpush.msra.mxu0 0.0
    %963 = vmatpush.msra.mxu0 0.0
    %964 = vmatpush.msra.mxu0 0.0
    %965 = vmatpush.msra.mxu0 0.0
    %966 = vmatpush.msra.mxu0 0.0
    %967 = vmatpush.msra.mxu0 0.0
    %968 = vmatpush.msra.mxu0 0.0
    %969 = vmatpush.msra.mxu0 0.0
    %970 = vmatpush.msra.mxu0 0.0
    %971 = vmatpush.msra.mxu0 %v121
    %972 = vmatpush.msra.mxu0 %v120
    %973 = vmatpush.msra.mxu0 %v119
    %974 = vmatpush.msra.mxu0 %v118
    %975 = vmatmul.f32.gmra.mxu0 %v957
    %v976 = vpop.f32.mrf.mxu0
    %v977 = vadd.f32 0.0, %v976
    %978 = vdwg.mxu0
    %v980 = vrot.slane %v977, 6
    %v981 = vrot.slane %v977, 7
    %v982 = vrot.slane %v977, 1
    %v983 = vrot.slane %v977, 2
    %v984 = vrot.slane %v977, 3
    %v985 = vrot.slane %v977, 4
    %v986 = vrot.slane %v977, 5
    %v995 = vadd.f32 %v169, %v980
    %v996 = vadd.f32 %v172, %v981
    %v997 = vadd.f32 %v175, %v977
    %v998 = vadd.f32 %v178, %v982
    %v999 = vadd.f32 %v181, %v983
    %v1000 = vadd.f32 %v184, %v984
    %v1001 = vadd.f32 %v187, %v985
    %v1002 = vadd.f32 %v190, %v986
    %v1003 = vxor.u32 %v995, 2147483648
    %v1004 = vxor.u32 %v996, 2147483648
    %v1005 = vxor.u32 %v997, 2147483648
    %v1006 = vxor.u32 %v998, 2147483648
    %v1007 = vxor.u32 %v999, 2147483648
    %v1008 = vxor.u32 %v1000, 2147483648
    %v1009 = vxor.u32 %v1001, 2147483648
    %v1010 = vxor.u32 %v1002, 2147483648
    %v1011 = vmul.f32 %v1003, 1.442695
    %v1012 = vpow.pop %v1011
    %v1013 = vmul.f32 %v1004, 1.442695
    %v1014 = vpow.pop %v1013
    %v1015 = vmul.f32 %v1005, 1.442695
    %v1016 = vpow.pop %v1015
    %v1017 = vmul.f32 %v1006, 1.442695
    %v1018 = vpow.pop %v1017
    %v1019 = vmul.f32 %v1007, 1.442695
    %v1020 = vpow.pop %v1019
    %v1021 = vmul.f32 %v1008, 1.442695
    %v1022 = vpow.pop %v1021
    %v1023 = vmul.f32 %v1009, 1.442695
    %v1024 = vpow.pop %v1023
    %v1025 = vmul.f32 %v1010, 1.442695
    %v1026 = vpow.pop %v1025
    %v1027 = vadd.f32 %v1012, 1.0
    %v1028 = vadd.f32 %v1014, 1.0
    %v1029 = vadd.f32 %v1016, 1.0
    %v1030 = vadd.f32 %v1018, 1.0
    %v1031 = vadd.f32 %v1020, 1.0
    %v1032 = vadd.f32 %v1022, 1.0
    %v1033 = vadd.f32 %v1024, 1.0
    %v1034 = vadd.f32 %v1026, 1.0
    %v1035 = vrcp.pop %v1027
    %v1036 = vmul.f32 %v1027, %v1035
    %v1037 = vsub.f32 1.0, %v1036
    %v1038 = vmul.f32 %v1035, %v1037
    %v1039 = vadd.f32 %v1035, %v1038
    %vm1040 = vweird.f32 %v1027
    %vm1041 = vweird.f32 %v1035
    %vm1042 = vmor %vm1040, %vm1041
    %v1043 = vsel %vm1042, %v1035, %v1039
    %v1044 = vand.u32 2147483647, %v1027
    %vm1045 = vcmp.eq.f32.partialorder %v1044, 8.507059e+37
    %v1046 = vand.u32 %v1027, 2147483648
    %v1047 = vor.u32 1.1754944e-38, %v1046
    %v1048 = vsel %vm1045, %v1047, %v1043
    %v1049 = vmul.f32 1.0, %v1048
    %v1050 = vrcp.pop %v1028
    %v1051 = vmul.f32 %v1028, %v1050
    %v1052 = vsub.f32 1.0, %v1051
    %v1053 = vmul.f32 %v1050, %v1052
    %v1054 = vadd.f32 %v1050, %v1053
    %vm1055 = vweird.f32 %v1028
    %vm1056 = vweird.f32 %v1050
    %vm1057 = vmor %vm1055, %vm1056
    %v1058 = vsel %vm1057, %v1050, %v1054
    %v1059 = vand.u32 2147483647, %v1028
    %vm1060 = vcmp.eq.f32.partialorder %v1059, 8.507059e+37
    %v1061 = vand.u32 %v1028, 2147483648
    %v1062 = vor.u32 1.1754944e-38, %v1061
    %v1063 = vsel %vm1060, %v1062, %v1058
    %v1064 = vmul.f32 1.0, %v1063
    %v1065 = vrcp.pop %v1029
    %v1066 = vmul.f32 %v1029, %v1065
    %v1067 = vsub.f32 1.0, %v1066
    %v1068 = vmul.f32 %v1065, %v1067
    %v1069 = vadd.f32 %v1065, %v1068
    %vm1070 = vweird.f32 %v1029
    %vm1071 = vweird.f32 %v1065
    %vm1072 = vmor %vm1070, %vm1071
    %v1073 = vsel %vm1072, %v1065, %v1069
    %v1074 = vand.u32 2147483647, %v1029
    %vm1075 = vcmp.eq.f32.partialorder %v1074, 8.507059e+37
    %v1076 = vand.u32 %v1029, 2147483648
    %v1077 = vor.u32 1.1754944e-38, %v1076
    %v1078 = vsel %vm1075, %v1077, %v1073
    %v1079 = vmul.f32 1.0, %v1078
    %v1080 = vrcp.pop %v1030
    %v1081 = vmul.f32 %v1030, %v1080
    %v1082 = vsub.f32 1.0, %v1081
    %v1083 = vmul.f32 %v1080, %v1082
    %v1084 = vadd.f32 %v1080, %v1083
    %vm1085 = vweird.f32 %v1030
    %vm1086 = vweird.f32 %v1080
    %vm1087 = vmor %vm1085, %vm1086
    %v1088 = vsel %vm1087, %v1080, %v1084
    %v1089 = vand.u32 2147483647, %v1030
    %vm1090 = vcmp.eq.f32.partialorder %v1089, 8.507059e+37
    %v1091 = vand.u32 %v1030, 2147483648
    %v1092 = vor.u32 1.1754944e-38, %v1091
    %v1093 = vsel %vm1090, %v1092, %v1088
    %v1094 = vmul.f32 1.0, %v1093
    %v1095 = vrcp.pop %v1031
    %v1096 = vmul.f32 %v1031, %v1095
    %v1097 = vsub.f32 1.0, %v1096
    %v1098 = vmul.f32 %v1095, %v1097
    %v1099 = vadd.f32 %v1095, %v1098
    %vm1100 = vweird.f32 %v1031
    %vm1101 = vweird.f32 %v1095
    %vm1102 = vmor %vm1100, %vm1101
    %v1103 = vsel %vm1102, %v1095, %v1099
    %v1104 = vand.u32 2147483647, %v1031
    %vm1105 = vcmp.eq.f32.partialorder %v1104, 8.507059e+37
    %v1106 = vand.u32 %v1031, 2147483648
    %v1107 = vor.u32 1.1754944e-38, %v1106
    %v1108 = vsel %vm1105, %v1107, %v1103
    %v1109 = vmul.f32 1.0, %v1108
    %v1110 = vrcp.pop %v1032
    %v1111 = vmul.f32 %v1032, %v1110
    %v1112 = vsub.f32 1.0, %v1111
    %v1113 = vmul.f32 %v1110, %v1112
    %v1114 = vadd.f32 %v1110, %v1113
    %vm1115 = vweird.f32 %v1032
    %vm1116 = vweird.f32 %v1110
    %vm1117 = vmor %vm1115, %vm1116
    %v1118 = vsel %vm1117, %v1110, %v1114
    %v1119 = vand.u32 2147483647, %v1032
    %vm1120 = vcmp.eq.f32.partialorder %v1119, 8.507059e+37
    %v1121 = vand.u32 %v1032, 2147483648
    %v1122 = vor.u32 1.1754944e-38, %v1121
    %v1123 = vsel %vm1120, %v1122, %v1118
    %v1124 = vmul.f32 1.0, %v1123
    %v1125 = vrcp.pop %v1033
    %v1126 = vmul.f32 %v1033, %v1125
    %v1127 = vsub.f32 1.0, %v1126
    %v1128 = vmul.f32 %v1125, %v1127
    %v1129 = vadd.f32 %v1125, %v1128
    %vm1130 = vweird.f32 %v1033
    %vm1131 = vweird.f32 %v1125
    %vm1132 = vmor %vm1130, %vm1131
    %v1133 = vsel %vm1132, %v1125, %v1129
    %v1134 = vand.u32 2147483647, %v1033
    %vm1135 = vcmp.eq.f32.partialorder %v1134, 8.507059e+37
    %v1136 = vand.u32 %v1033, 2147483648
    %v1137 = vor.u32 1.1754944e-38, %v1136
    %v1138 = vsel %vm1135, %v1137, %v1133
    %v1139 = vmul.f32 1.0, %v1138
    %v1140 = vrcp.pop %v1034
    %v1141 = vmul.f32 %v1034, %v1140
    %v1142 = vsub.f32 1.0, %v1141
    %v1143 = vmul.f32 %v1140, %v1142
    %v1144 = vadd.f32 %v1140, %v1143
    %vm1145 = vweird.f32 %v1034
    %vm1146 = vweird.f32 %v1140
    %vm1147 = vmor %vm1145, %vm1146
    %v1148 = vsel %vm1147, %v1140, %v1144
    %v1149 = vand.u32 2147483647, %v1034
    %vm1150 = vcmp.eq.f32.partialorder %v1149, 8.507059e+37
    %v1151 = vand.u32 %v1034, 2147483648
    %v1152 = vor.u32 1.1754944e-38, %v1151
    %v1153 = vsel %vm1150, %v1152, %v1148
    %v1154 = vmul.f32 1.0, %v1153
    %v1155 = vtanh.pop %v995
    %v1156 = vtanh.pop %v996
    %v1157 = vtanh.pop %v997
    %v1158 = vtanh.pop %v998
    %v1159 = vtanh.pop %v999
    %v1160 = vtanh.pop %v1000
    %v1161 = vtanh.pop %v1001
    %v1162 = vtanh.pop %v1002
    %v1171 = vrot.slane %v877, 7
    %v1172 = vrot.slane %v878, 7
    %v1173 = vrot.slane %v879, 7
    %v1174 = vrot.slane %v880, 7
    %v1175 = vrot.slane %v881, 7
    %v1176 = vrot.slane %v882, 7
    %v1177 = vrot.slane %v883, 7
    %v1178 = vrot.slane %v884, 7
    %v1187 = vmul.f32 %v1049, %v1171
    %v1188 = vmul.f32 %v1064, %v1172
    %v1189 = vmul.f32 %v1079, %v1173
    %v1190 = vmul.f32 %v1094, %v1174
    %v1191 = vmul.f32 %v1109, %v1175
    %v1192 = vmul.f32 %v1124, %v1176
    %v1193 = vmul.f32 %v1139, %v1177
    %v1194 = vmul.f32 %v1154, %v1178
    %1203 = vrot.lane.b32.xlu0 %v1155, 32
    %v1204 = vpop.permute.xlu0 %1203
    %1205 = vrot.lane.b32.xlu0 %v1156, 32
    %v1206 = vpop.permute.xlu0 %1205
    %1207 = vrot.lane.b32.xlu0 %v1157, 32
    %v1208 = vpop.permute.xlu0 %1207
    %1209 = vrot.lane.b32.xlu0 %v1158, 32
    %v1210 = vpop.permute.xlu0 %1209
    %1211 = vrot.lane.b32.xlu0 %v1159, 32
    %v1212 = vpop.permute.xlu0 %1211
    %1213 = vrot.lane.b32.xlu0 %v1160, 32
    %v1214 = vpop.permute.xlu0 %1213
    %1215 = vrot.lane.b32.xlu0 %v1161, 32
    %v1216 = vpop.permute.xlu0 %1215
    %1217 = vrot.lane.b32.xlu0 %v1162, 32
    %v1218 = vpop.permute.xlu0 %1217
    %v1227 = vmul.f32 %v1049, %v1204
    %v1228 = vmul.f32 %v1064, %v1206
    %v1229 = vmul.f32 %v1079, %v1208
    %v1230 = vmul.f32 %v1094, %v1210
    %v1231 = vmul.f32 %v1109, %v1212
    %v1232 = vmul.f32 %v1124, %v1214
    %v1233 = vmul.f32 %v1139, %v1216
    %v1234 = vmul.f32 %v1154, %v1218
    %1243 = vrot.lane.b32.xlu0 %v1227, 32
    %v1244 = vpop.permute.xlu0 %1243
    %1245 = vrot.lane.b32.xlu0 %v1228, 32
    %v1246 = vpop.permute.xlu0 %1245
    %1247 = vrot.lane.b32.xlu0 %v1229, 32
    %v1248 = vpop.permute.xlu0 %1247
    %1249 = vrot.lane.b32.xlu0 %v1230, 32
    %v1250 = vpop.permute.xlu0 %1249
    %1251 = vrot.lane.b32.xlu0 %v1231, 32
    %v1252 = vpop.permute.xlu0 %1251
    %1253 = vrot.lane.b32.xlu0 %v1232, 32
    %v1254 = vpop.permute.xlu0 %1253
    %1255 = vrot.lane.b32.xlu0 %v1233, 32
    %v1256 = vpop.permute.xlu0 %1255
    %1257 = vrot.lane.b32.xlu0 %v1234, 32
    %v1258 = vpop.permute.xlu0 %1257
    %v1267 = vadd.f32 %v1187, %v1244
    %v1268 = vadd.f32 %v1188, %v1246
    %v1269 = vadd.f32 %v1189, %v1248
    %v1270 = vadd.f32 %v1190, %v1250
    %v1271 = vadd.f32 %v1191, %v1252
    %v1272 = vadd.f32 %v1192, %v1254
    %v1273 = vadd.f32 %v1193, %v1256
    %v1274 = vadd.f32 %v1194, %v1258
    %v1275 = vtanh.pop %v1267
    %v1276 = vtanh.pop %v1268
    %v1277 = vtanh.pop %v1269
    %v1278 = vtanh.pop %v1270
    %v1279 = vtanh.pop %v1271
    %v1280 = vtanh.pop %v1272
    %v1281 = vtanh.pop %v1273
    %v1282 = vtanh.pop %v1274
    %1291 = vrot.lane.b32.xlu0 %v1275, 32
    %v1292 = vpop.permute.xlu0 %1291
    %1293 = vrot.lane.b32.xlu0 %v1276, 32
    %v1294 = vpop.permute.xlu0 %1293
    %1295 = vrot.lane.b32.xlu0 %v1277, 32
    %v1296 = vpop.permute.xlu0 %1295
    %1297 = vrot.lane.b32.xlu0 %v1278, 32
    %v1298 = vpop.permute.xlu0 %1297
    %1299 = vrot.lane.b32.xlu0 %v1279, 32
    %v1300 = vpop.permute.xlu0 %1299
    %1301 = vrot.lane.b32.xlu0 %v1280, 32
    %v1302 = vpop.permute.xlu0 %1301
    %1303 = vrot.lane.b32.xlu0 %v1281, 32
    %v1304 = vpop.permute.xlu0 %1303
    %1305 = vrot.lane.b32.xlu0 %v1282, 32
    %v1306 = vpop.permute.xlu0 %1305
    %v1315 = vmul.f32 %v1049, %v1292
    %v1316 = vmul.f32 %v1064, %v1294
    %v1317 = vmul.f32 %v1079, %v1296
    %v1318 = vmul.f32 %v1094, %v1298
    %v1319 = vmul.f32 %v1109, %v1300
    %v1320 = vmul.f32 %v1124, %v1302
    %v1321 = vmul.f32 %v1139, %v1304
    %v1322 = vmul.f32 %v1154, %v1306
    %v1331 = vrot.slane %v1315, 2
    %v1332 = vrot.slane %v1316, 1
    %v1333 = vsel %vm545, %v1332, %v1331
    %v1334 = vsel %vm548, %v1317, %v1333
    %v1335 = vrot.slane %v1318, 7
    %v1336 = vsel %vm551, %v1335, %v1334
    %v1337 = vrot.slane %v1319, 6
    %v1338 = vsel %vm554, %v1337, %v1336
    %v1339 = vrot.slane %v1320, 5
    %v1340 = vsel %vm557, %v1339, %v1338
    %v1341 = vrot.slane %v1321, 4
    %v1342 = vsel %vm560, %v1341, %v1340
    %v1343 = vrot.slane %v1322, 3
    %v1344 = vsel %vm563, %v1343, %v1342
    %1345 = vrot.lane.b32.xlu0 %v1344, 64
    %v1346 = vpop.permute.xlu0 %1345
    %v1347 = vsel %vm192, %v1346, 0
    %1349 = vmatpush.msra.mxu0 0.0
    %1350 = vmatpush.msra.mxu0 0.0
    %1351 = vmatpush.msra.mxu0 0.0
    %1352 = vmatpush.msra.mxu0 0.0
    %1353 = vmatpush.msra.mxu0 0.0
    %1354 = vmatpush.msra.mxu0 0.0
    %1355 = vmatpush.msra.mxu0 0.0
    %1356 = vmatpush.msra.mxu0 0.0
    %1357 = vmatpush.msra.mxu0 0.0
    %1358 = vmatpush.msra.mxu0 0.0
    %1359 = vmatpush.msra.mxu0 0.0
    %1360 = vmatpush.msra.mxu0 0.0
    %1361 = vmatpush.msra.mxu0 %v121
    %1362 = vmatpush.msra.mxu0 %v120
    %1363 = vmatpush.msra.mxu0 %v119
    %1364 = vmatpush.msra.mxu0 %v118
    %1365 = vmatmul.f32.gmra.mxu0 %v1347
    %v1366 = vpop.f32.mrf.mxu0
    %v1367 = vadd.f32 0.0, %v1366
    %1368 = vdwg.mxu0
    %v1370 = vrot.slane %v1367, 5
    %v1371 = vrot.slane %v1367, 6
    %v1372 = vrot.slane %v1367, 7
    %v1373 = vrot.slane %v1367, 1
    %v1374 = vrot.slane %v1367, 2
    %v1375 = vrot.slane %v1367, 3
    %v1376 = vrot.slane %v1367, 4
    %v1385 = vadd.f32 %v169, %v1370
    %v1386 = vadd.f32 %v172, %v1371
    %v1387 = vadd.f32 %v175, %v1372
    %v1388 = vadd.f32 %v178, %v1367
    %v1389 = vadd.f32 %v181, %v1373
    %v1390 = vadd.f32 %v184, %v1374
    %v1391 = vadd.f32 %v187, %v1375
    %v1392 = vadd.f32 %v190, %v1376
    %v1393 = vxor.u32 %v1385, 2147483648
    %v1394 = vxor.u32 %v1386, 2147483648
    %v1395 = vxor.u32 %v1387, 2147483648
    %v1396 = vxor.u32 %v1388, 2147483648
    %v1397 = vxor.u32 %v1389, 2147483648
    %v1398 = vxor.u32 %v1390, 2147483648
    %v1399 = vxor.u32 %v1391, 2147483648
    %v1400 = vxor.u32 %v1392, 2147483648
    %v1401 = vmul.f32 %v1393, 1.442695
    %v1402 = vpow.pop %v1401
    %v1403 = vmul.f32 %v1394, 1.442695
    %v1404 = vpow.pop %v1403
    %v1405 = vmul.f32 %v1395, 1.442695
    %v1406 = vpow.pop %v1405
    %v1407 = vmul.f32 %v1396, 1.442695
    %v1408 = vpow.pop %v1407
    %v1409 = vmul.f32 %v1397, 1.442695
    %v1410 = vpow.pop %v1409
    %v1411 = vmul.f32 %v1398, 1.442695
    %v1412 = vpow.pop %v1411
    %v1413 = vmul.f32 %v1399, 1.442695
    %v1414 = vpow.pop %v1413
    %v1415 = vmul.f32 %v1400, 1.442695
    %v1416 = vpow.pop %v1415
    %v1417 = vadd.f32 %v1402, 1.0
    %v1418 = vadd.f32 %v1404, 1.0
    %v1419 = vadd.f32 %v1406, 1.0
    %v1420 = vadd.f32 %v1408, 1.0
    %v1421 = vadd.f32 %v1410, 1.0
    %v1422 = vadd.f32 %v1412, 1.0
    %v1423 = vadd.f32 %v1414, 1.0
    %v1424 = vadd.f32 %v1416, 1.0
    %v1425 = vrcp.pop %v1417
    %v1426 = vmul.f32 %v1417, %v1425
    %v1427 = vsub.f32 1.0, %v1426
    %v1428 = vmul.f32 %v1425, %v1427
    %v1429 = vadd.f32 %v1425, %v1428
    %vm1430 = vweird.f32 %v1417
    %vm1431 = vweird.f32 %v1425
    %vm1432 = vmor %vm1430, %vm1431
    %v1433 = vsel %vm1432, %v1425, %v1429
    %v1434 = vand.u32 2147483647, %v1417
    %vm1435 = vcmp.eq.f32.partialorder %v1434, 8.507059e+37
    %v1436 = vand.u32 %v1417, 2147483648
    %v1437 = vor.u32 1.1754944e-38, %v1436
    %v1438 = vsel %vm1435, %v1437, %v1433
    %v1439 = vmul.f32 1.0, %v1438
    %v1440 = vrcp.pop %v1418
    %v1441 = vmul.f32 %v1418, %v1440
    %v1442 = vsub.f32 1.0, %v1441
    %v1443 = vmul.f32 %v1440, %v1442
    %v1444 = vadd.f32 %v1440, %v1443
    %vm1445 = vweird.f32 %v1418
    %vm1446 = vweird.f32 %v1440
    %vm1447 = vmor %vm1445, %vm1446
    %v1448 = vsel %vm1447, %v1440, %v1444
    %v1449 = vand.u32 2147483647, %v1418
    %vm1450 = vcmp.eq.f32.partialorder %v1449, 8.507059e+37
    %v1451 = vand.u32 %v1418, 2147483648
    %v1452 = vor.u32 1.1754944e-38, %v1451
    %v1453 = vsel %vm1450, %v1452, %v1448
    %v1454 = vmul.f32 1.0, %v1453
    %v1455 = vrcp.pop %v1419
    %v1456 = vmul.f32 %v1419, %v1455
    %v1457 = vsub.f32 1.0, %v1456
    %v1458 = vmul.f32 %v1455, %v1457
    %v1459 = vadd.f32 %v1455, %v1458
    %vm1460 = vweird.f32 %v1419
    %vm1461 = vweird.f32 %v1455
    %vm1462 = vmor %vm1460, %vm1461
    %v1463 = vsel %vm1462, %v1455, %v1459
    %v1464 = vand.u32 2147483647, %v1419
    %vm1465 = vcmp.eq.f32.partialorder %v1464, 8.507059e+37
    %v1466 = vand.u32 %v1419, 2147483648
    %v1467 = vor.u32 1.1754944e-38, %v1466
    %v1468 = vsel %vm1465, %v1467, %v1463
    %v1469 = vmul.f32 1.0, %v1468
    %v1470 = vrcp.pop %v1420
    %v1471 = vmul.f32 %v1420, %v1470
    %v1472 = vsub.f32 1.0, %v1471
    %v1473 = vmul.f32 %v1470, %v1472
    %v1474 = vadd.f32 %v1470, %v1473
    %vm1475 = vweird.f32 %v1420
    %vm1476 = vweird.f32 %v1470
    %vm1477 = vmor %vm1475, %vm1476
    %v1478 = vsel %vm1477, %v1470, %v1474
    %v1479 = vand.u32 2147483647, %v1420
    %vm1480 = vcmp.eq.f32.partialorder %v1479, 8.507059e+37
    %v1481 = vand.u32 %v1420, 2147483648
    %v1482 = vor.u32 1.1754944e-38, %v1481
    %v1483 = vsel %vm1480, %v1482, %v1478
    %v1484 = vmul.f32 1.0, %v1483
    %v1485 = vrcp.pop %v1421
    %v1486 = vmul.f32 %v1421, %v1485
    %v1487 = vsub.f32 1.0, %v1486
    %v1488 = vmul.f32 %v1485, %v1487
    %v1489 = vadd.f32 %v1485, %v1488
    %vm1490 = vweird.f32 %v1421
    %vm1491 = vweird.f32 %v1485
    %vm1492 = vmor %vm1490, %vm1491
    %v1493 = vsel %vm1492, %v1485, %v1489
    %v1494 = vand.u32 2147483647, %v1421
    %vm1495 = vcmp.eq.f32.partialorder %v1494, 8.507059e+37
    %v1496 = vand.u32 %v1421, 2147483648
    %v1497 = vor.u32 1.1754944e-38, %v1496
    %v1498 = vsel %vm1495, %v1497, %v1493
    %v1499 = vmul.f32 1.0, %v1498
    %v1500 = vrcp.pop %v1422
    %v1501 = vmul.f32 %v1422, %v1500
    %v1502 = vsub.f32 1.0, %v1501
    %v1503 = vmul.f32 %v1500, %v1502
    %v1504 = vadd.f32 %v1500, %v1503
    %vm1505 = vweird.f32 %v1422
    %vm1506 = vweird.f32 %v1500
    %vm1507 = vmor %vm1505, %vm1506
    %v1508 = vsel %vm1507, %v1500, %v1504
    %v1509 = vand.u32 2147483647, %v1422
    %vm1510 = vcmp.eq.f32.partialorder %v1509, 8.507059e+37
    %v1511 = vand.u32 %v1422, 2147483648
    %v1512 = vor.u32 1.1754944e-38, %v1511
    %v1513 = vsel %vm1510, %v1512, %v1508
    %v1514 = vmul.f32 1.0, %v1513
    %v1515 = vrcp.pop %v1423
    %v1516 = vmul.f32 %v1423, %v1515
    %v1517 = vsub.f32 1.0, %v1516
    %v1518 = vmul.f32 %v1515, %v1517
    %v1519 = vadd.f32 %v1515, %v1518
    %vm1520 = vweird.f32 %v1423
    %vm1521 = vweird.f32 %v1515
    %vm1522 = vmor %vm1520, %vm1521
    %v1523 = vsel %vm1522, %v1515, %v1519
    %v1524 = vand.u32 2147483647, %v1423
    %vm1525 = vcmp.eq.f32.partialorder %v1524, 8.507059e+37
    %v1526 = vand.u32 %v1423, 2147483648
    %v1527 = vor.u32 1.1754944e-38, %v1526
    %v1528 = vsel %vm1525, %v1527, %v1523
    %v1529 = vmul.f32 1.0, %v1528
    %v1530 = vrcp.pop %v1424
    %v1531 = vmul.f32 %v1424, %v1530
    %v1532 = vsub.f32 1.0, %v1531
    %v1533 = vmul.f32 %v1530, %v1532
    %v1534 = vadd.f32 %v1530, %v1533
    %vm1535 = vweird.f32 %v1424
    %vm1536 = vweird.f32 %v1530
    %vm1537 = vmor %vm1535, %vm1536
    %v1538 = vsel %vm1537, %v1530, %v1534
    %v1539 = vand.u32 2147483647, %v1424
    %vm1540 = vcmp.eq.f32.partialorder %v1539, 8.507059e+37
    %v1541 = vand.u32 %v1424, 2147483648
    %v1542 = vor.u32 1.1754944e-38, %v1541
    %v1543 = vsel %vm1540, %v1542, %v1538
    %v1544 = vmul.f32 1.0, %v1543
    %v1545 = vtanh.pop %v1385
    %v1546 = vtanh.pop %v1386
    %v1547 = vtanh.pop %v1387
    %v1548 = vtanh.pop %v1388
    %v1549 = vtanh.pop %v1389
    %v1550 = vtanh.pop %v1390
    %v1551 = vtanh.pop %v1391
    %v1552 = vtanh.pop %v1392
    %v1561 = vrot.slane %v1267, 7
    %v1562 = vrot.slane %v1268, 7
    %v1563 = vrot.slane %v1269, 7
    %v1564 = vrot.slane %v1270, 7
    %v1565 = vrot.slane %v1271, 7
    %v1566 = vrot.slane %v1272, 7
    %v1567 = vrot.slane %v1273, 7
    %v1568 = vrot.slane %v1274, 7
    %v1577 = vmul.f32 %v1439, %v1561
    %v1578 = vmul.f32 %v1454, %v1562
    %v1579 = vmul.f32 %v1469, %v1563
    %v1580 = vmul.f32 %v1484, %v1564
    %v1581 = vmul.f32 %v1499, %v1565
    %v1582 = vmul.f32 %v1514, %v1566
    %v1583 = vmul.f32 %v1529, %v1567
    %v1584 = vmul.f32 %v1544, %v1568
    %1593 = vrot.lane.b32.xlu0 %v1545, 32
    %v1594 = vpop.permute.xlu0 %1593
    %1595 = vrot.lane.b32.xlu0 %v1546, 32
    %v1596 = vpop.permute.xlu0 %1595
    %1597 = vrot.lane.b32.xlu0 %v1547, 32
    %v1598 = vpop.permute.xlu0 %1597
    %1599 = vrot.lane.b32.xlu0 %v1548, 32
    %v1600 = vpop.permute.xlu0 %1599
    %1601 = vrot.lane.b32.xlu0 %v1549, 32
    %v1602 = vpop.permute.xlu0 %1601
    %1603 = vrot.lane.b32.xlu0 %v1550, 32
    %v1604 = vpop.permute.xlu0 %1603
    %1605 = vrot.lane.b32.xlu0 %v1551, 32
    %v1606 = vpop.permute.xlu0 %1605
    %1607 = vrot.lane.b32.xlu0 %v1552, 32
    %v1608 = vpop.permute.xlu0 %1607
    %v1617 = vmul.f32 %v1439, %v1594
    %v1618 = vmul.f32 %v1454, %v1596
    %v1619 = vmul.f32 %v1469, %v1598
    %v1620 = vmul.f32 %v1484, %v1600
    %v1621 = vmul.f32 %v1499, %v1602
    %v1622 = vmul.f32 %v1514, %v1604
    %v1623 = vmul.f32 %v1529, %v1606
    %v1624 = vmul.f32 %v1544, %v1608
    %1633 = vrot.lane.b32.xlu0 %v1617, 32
    %v1634 = vpop.permute.xlu0 %1633
    %1635 = vrot.lane.b32.xlu0 %v1618, 32
    %v1636 = vpop.permute.xlu0 %1635
    %1637 = vrot.lane.b32.xlu0 %v1619, 32
    %v1638 = vpop.permute.xlu0 %1637
    %1639 = vrot.lane.b32.xlu0 %v1620, 32
    %v1640 = vpop.permute.xlu0 %1639
    %1641 = vrot.lane.b32.xlu0 %v1621, 32
    %v1642 = vpop.permute.xlu0 %1641
    %1643 = vrot.lane.b32.xlu0 %v1622, 32
    %v1644 = vpop.permute.xlu0 %1643
    %1645 = vrot.lane.b32.xlu0 %v1623, 32
    %v1646 = vpop.permute.xlu0 %1645
    %1647 = vrot.lane.b32.xlu0 %v1624, 32
    %v1648 = vpop.permute.xlu0 %1647
    %v1657 = vadd.f32 %v1577, %v1634
    %v1658 = vadd.f32 %v1578, %v1636
    %v1659 = vadd.f32 %v1579, %v1638
    %v1660 = vadd.f32 %v1580, %v1640
    %v1661 = vadd.f32 %v1581, %v1642
    %v1662 = vadd.f32 %v1582, %v1644
    %v1663 = vadd.f32 %v1583, %v1646
    %v1664 = vadd.f32 %v1584, %v1648
    %v1665 = vtanh.pop %v1657
    %v1666 = vtanh.pop %v1658
    %v1667 = vtanh.pop %v1659
    %v1668 = vtanh.pop %v1660
    %v1669 = vtanh.pop %v1661
    %v1670 = vtanh.pop %v1662
    %v1671 = vtanh.pop %v1663
    %v1672 = vtanh.pop %v1664
    %1681 = vrot.lane.b32.xlu0 %v1665, 32
    %v1682 = vpop.permute.xlu0 %1681
    %1683 = vrot.lane.b32.xlu0 %v1666, 32
    %v1684 = vpop.permute.xlu0 %1683
    %1685 = vrot.lane.b32.xlu0 %v1667, 32
    %v1686 = vpop.permute.xlu0 %1685
    %1687 = vrot.lane.b32.xlu0 %v1668, 32
    %v1688 = vpop.permute.xlu0 %1687
    %1689 = vrot.lane.b32.xlu0 %v1669, 32
    %v1690 = vpop.permute.xlu0 %1689
    %1691 = vrot.lane.b32.xlu0 %v1670, 32
    %v1692 = vpop.permute.xlu0 %1691
    %1693 = vrot.lane.b32.xlu0 %v1671, 32
    %v1694 = vpop.permute.xlu0 %1693
    %1695 = vrot.lane.b32.xlu0 %v1672, 32
    %v1696 = vpop.permute.xlu0 %1695
    %v1705 = vmul.f32 %v1439, %v1682
    %v1706 = vmul.f32 %v1454, %v1684
    %v1707 = vmul.f32 %v1469, %v1686
    %v1708 = vmul.f32 %v1484, %v1688
    %v1709 = vmul.f32 %v1499, %v1690
    %v1710 = vmul.f32 %v1514, %v1692
    %v1711 = vmul.f32 %v1529, %v1694
    %v1712 = vmul.f32 %v1544, %v1696
    %v1721 = vrot.slane %v1705, 3
    %v1722 = vrot.slane %v1706, 2
    %v1723 = vsel %vm545, %v1722, %v1721
    %v1724 = vrot.slane %v1707, 1
    %v1725 = vsel %vm548, %v1724, %v1723
    %v1726 = vsel %vm551, %v1708, %v1725
    %v1727 = vrot.slane %v1709, 7
    %v1728 = vsel %vm554, %v1727, %v1726
    %v1729 = vrot.slane %v1710, 6
    %v1730 = vsel %vm557, %v1729, %v1728
    %v1731 = vrot.slane %v1711, 5
    %v1732 = vsel %vm560, %v1731, %v1730
    %v1733 = vrot.slane %v1712, 4
    %v1734 = vsel %vm563, %v1733, %v1732
    %1735 = vrot.lane.b32.xlu0 %v1734, 64
    %v1736 = vpop.permute.xlu0 %1735
    %v1737 = vsel %vm192, %v1736, 0
    %1739 = vmatpush.msra.mxu0 0.0
    %1740 = vmatpush.msra.mxu0 0.0
    %1741 = vmatpush.msra.mxu0 0.0
    %1742 = vmatpush.msra.mxu0 0.0
    %1743 = vmatpush.msra.mxu0 0.0
    %1744 = vmatpush.msra.mxu0 0.0
    %1745 = vmatpush.msra.mxu0 0.0
    %1746 = vmatpush.msra.mxu0 0.0
    %1747 = vmatpush.msra.mxu0 0.0
    %1748 = vmatpush.msra.mxu0 0.0
    %1749 = vmatpush.msra.mxu0 0.0
    %1750 = vmatpush.msra.mxu0 0.0
    %1751 = vmatpush.msra.mxu0 %v121
    %1752 = vmatpush.msra.mxu0 %v120
    %1753 = vmatpush.msra.mxu0 %v119
    %1754 = vmatpush.msra.mxu0 %v118
    %1755 = vmatmul.f32.gmra.mxu0 %v1737
    %v1756 = vpop.f32.mrf.mxu0
    %v1757 = vadd.f32 0.0, %v1756
    %1758 = vdwg.mxu0
    %v1760 = vrot.slane %v1757, 4
    %v1761 = vrot.slane %v1757, 5
    %v1762 = vrot.slane %v1757, 6
    %v1763 = vrot.slane %v1757, 7
    %v1764 = vrot.slane %v1757, 1
    %v1765 = vrot.slane %v1757, 2
    %v1766 = vrot.slane %v1757, 3
    %v1775 = vadd.f32 %v169, %v1760
    %v1776 = vadd.f32 %v172, %v1761
    %v1777 = vadd.f32 %v175, %v1762
    %v1778 = vadd.f32 %v178, %v1763
    %v1779 = vadd.f32 %v181, %v1757
    %v1780 = vadd.f32 %v184, %v1764
    %v1781 = vadd.f32 %v187, %v1765
    %v1782 = vadd.f32 %v190, %v1766
    %v1783 = vxor.u32 %v1775, 2147483648
    %v1784 = vxor.u32 %v1776, 2147483648
    %v1785 = vxor.u32 %v1777, 2147483648
    %v1786 = vxor.u32 %v1778, 2147483648
    %v1787 = vxor.u32 %v1779, 2147483648
    %v1788 = vxor.u32 %v1780, 2147483648
    %v1789 = vxor.u32 %v1781, 2147483648
    %v1790 = vxor.u32 %v1782, 2147483648
    %v1791 = vmul.f32 %v1783, 1.442695
    %v1792 = vpow.pop %v1791
    %v1793 = vmul.f32 %v1784, 1.442695
    %v1794 = vpow.pop %v1793
    %v1795 = vmul.f32 %v1785, 1.442695
    %v1796 = vpow.pop %v1795
    %v1797 = vmul.f32 %v1786, 1.442695
    %v1798 = vpow.pop %v1797
    %v1799 = vmul.f32 %v1787, 1.442695
    %v1800 = vpow.pop %v1799
    %v1801 = vmul.f32 %v1788, 1.442695
    %v1802 = vpow.pop %v1801
    %v1803 = vmul.f32 %v1789, 1.442695
    %v1804 = vpow.pop %v1803
    %v1805 = vmul.f32 %v1790, 1.442695
    %v1806 = vpow.pop %v1805
    %v1807 = vadd.f32 %v1792, 1.0
    %v1808 = vadd.f32 %v1794, 1.0
    %v1809 = vadd.f32 %v1796, 1.0
    %v1810 = vadd.f32 %v1798, 1.0
    %v1811 = vadd.f32 %v1800, 1.0
    %v1812 = vadd.f32 %v1802, 1.0
    %v1813 = vadd.f32 %v1804, 1.0
    %v1814 = vadd.f32 %v1806, 1.0
    %v1815 = vrcp.pop %v1807
    %v1816 = vmul.f32 %v1807, %v1815
    %v1817 = vsub.f32 1.0, %v1816
    %v1818 = vmul.f32 %v1815, %v1817
    %v1819 = vadd.f32 %v1815, %v1818
    %vm1820 = vweird.f32 %v1807
    %vm1821 = vweird.f32 %v1815
    %vm1822 = vmor %vm1820, %vm1821
    %v1823 = vsel %vm1822, %v1815, %v1819
    %v1824 = vand.u32 2147483647, %v1807
    %vm1825 = vcmp.eq.f32.partialorder %v1824, 8.507059e+37
    %v1826 = vand.u32 %v1807, 2147483648
    %v1827 = vor.u32 1.1754944e-38, %v1826
    %v1828 = vsel %vm1825, %v1827, %v1823
    %v1829 = vmul.f32 1.0, %v1828
    %v1830 = vrcp.pop %v1808
    %v1831 = vmul.f32 %v1808, %v1830
    %v1832 = vsub.f32 1.0, %v1831
    %v1833 = vmul.f32 %v1830, %v1832
    %v1834 = vadd.f32 %v1830, %v1833
    %vm1835 = vweird.f32 %v1808
    %vm1836 = vweird.f32 %v1830
    %vm1837 = vmor %vm1835, %vm1836
    %v1838 = vsel %vm1837, %v1830, %v1834
    %v1839 = vand.u32 2147483647, %v1808
    %vm1840 = vcmp.eq.f32.partialorder %v1839, 8.507059e+37
    %v1841 = vand.u32 %v1808, 2147483648
    %v1842 = vor.u32 1.1754944e-38, %v1841
    %v1843 = vsel %vm1840, %v1842, %v1838
    %v1844 = vmul.f32 1.0, %v1843
    %v1845 = vrcp.pop %v1809
    %v1846 = vmul.f32 %v1809, %v1845
    %v1847 = vsub.f32 1.0, %v1846
    %v1848 = vmul.f32 %v1845, %v1847
    %v1849 = vadd.f32 %v1845, %v1848
    %vm1850 = vweird.f32 %v1809
    %vm1851 = vweird.f32 %v1845
    %vm1852 = vmor %vm1850, %vm1851
    %v1853 = vsel %vm1852, %v1845, %v1849
    %v1854 = vand.u32 2147483647, %v1809
    %vm1855 = vcmp.eq.f32.partialorder %v1854, 8.507059e+37
    %v1856 = vand.u32 %v1809, 2147483648
    %v1857 = vor.u32 1.1754944e-38, %v1856
    %v1858 = vsel %vm1855, %v1857, %v1853
    %v1859 = vmul.f32 1.0, %v1858
    %v1860 = vrcp.pop %v1810
    %v1861 = vmul.f32 %v1810, %v1860
    %v1862 = vsub.f32 1.0, %v1861
    %v1863 = vmul.f32 %v1860, %v1862
    %v1864 = vadd.f32 %v1860, %v1863
    %vm1865 = vweird.f32 %v1810
    %vm1866 = vweird.f32 %v1860
    %vm1867 = vmor %vm1865, %vm1866
    %v1868 = vsel %vm1867, %v1860, %v1864
    %v1869 = vand.u32 2147483647, %v1810
    %vm1870 = vcmp.eq.f32.partialorder %v1869, 8.507059e+37
    %v1871 = vand.u32 %v1810, 2147483648
    %v1872 = vor.u32 1.1754944e-38, %v1871
    %v1873 = vsel %vm1870, %v1872, %v1868
    %v1874 = vmul.f32 1.0, %v1873
    %v1875 = vrcp.pop %v1811
    %v1876 = vmul.f32 %v1811, %v1875
    %v1877 = vsub.f32 1.0, %v1876
    %v1878 = vmul.f32 %v1875, %v1877
    %v1879 = vadd.f32 %v1875, %v1878
    %vm1880 = vweird.f32 %v1811
    %vm1881 = vweird.f32 %v1875
    %vm1882 = vmor %vm1880, %vm1881
    %v1883 = vsel %vm1882, %v1875, %v1879
    %v1884 = vand.u32 2147483647, %v1811
    %vm1885 = vcmp.eq.f32.partialorder %v1884, 8.507059e+37
    %v1886 = vand.u32 %v1811, 2147483648
    %v1887 = vor.u32 1.1754944e-38, %v1886
    %v1888 = vsel %vm1885, %v1887, %v1883
    %v1889 = vmul.f32 1.0, %v1888
    %v1890 = vrcp.pop %v1812
    %v1891 = vmul.f32 %v1812, %v1890
    %v1892 = vsub.f32 1.0, %v1891
    %v1893 = vmul.f32 %v1890, %v1892
    %v1894 = vadd.f32 %v1890, %v1893
    %vm1895 = vweird.f32 %v1812
    %vm1896 = vweird.f32 %v1890
    %vm1897 = vmor %vm1895, %vm1896
    %v1898 = vsel %vm1897, %v1890, %v1894
    %v1899 = vand.u32 2147483647, %v1812
    %vm1900 = vcmp.eq.f32.partialorder %v1899, 8.507059e+37
    %v1901 = vand.u32 %v1812, 2147483648
    %v1902 = vor.u32 1.1754944e-38, %v1901
    %v1903 = vsel %vm1900, %v1902, %v1898
    %v1904 = vmul.f32 1.0, %v1903
    %v1905 = vrcp.pop %v1813
    %v1906 = vmul.f32 %v1813, %v1905
    %v1907 = vsub.f32 1.0, %v1906
    %v1908 = vmul.f32 %v1905, %v1907
    %v1909 = vadd.f32 %v1905, %v1908
    %vm1910 = vweird.f32 %v1813
    %vm1911 = vweird.f32 %v1905
    %vm1912 = vmor %vm1910, %vm1911
    %v1913 = vsel %vm1912, %v1905, %v1909
    %v1914 = vand.u32 2147483647, %v1813
    %vm1915 = vcmp.eq.f32.partialorder %v1914, 8.507059e+37
    %v1916 = vand.u32 %v1813, 2147483648
    %v1917 = vor.u32 1.1754944e-38, %v1916
    %v1918 = vsel %vm1915, %v1917, %v1913
    %v1919 = vmul.f32 1.0, %v1918
    %v1920 = vrcp.pop %v1814
    %v1921 = vmul.f32 %v1814, %v1920
    %v1922 = vsub.f32 1.0, %v1921
    %v1923 = vmul.f32 %v1920, %v1922
    %v1924 = vadd.f32 %v1920, %v1923
    %vm1925 = vweird.f32 %v1814
    %vm1926 = vweird.f32 %v1920
    %vm1927 = vmor %vm1925, %vm1926
    %v1928 = vsel %vm1927, %v1920, %v1924
    %v1929 = vand.u32 2147483647, %v1814
    %vm1930 = vcmp.eq.f32.partialorder %v1929, 8.507059e+37
    %v1931 = vand.u32 %v1814, 2147483648
    %v1932 = vor.u32 1.1754944e-38, %v1931
    %v1933 = vsel %vm1930, %v1932, %v1928
    %v1934 = vmul.f32 1.0, %v1933
    %v1935 = vtanh.pop %v1775
    %v1936 = vtanh.pop %v1776
    %v1937 = vtanh.pop %v1777
    %v1938 = vtanh.pop %v1778
    %v1939 = vtanh.pop %v1779
    %v1940 = vtanh.pop %v1780
    %v1941 = vtanh.pop %v1781
    %v1942 = vtanh.pop %v1782
    %v1951 = vrot.slane %v1657, 7
    %v1952 = vrot.slane %v1658, 7
    %v1953 = vrot.slane %v1659, 7
    %v1954 = vrot.slane %v1660, 7
    %v1955 = vrot.slane %v1661, 7
    %v1956 = vrot.slane %v1662, 7
    %v1957 = vrot.slane %v1663, 7
    %v1958 = vrot.slane %v1664, 7
    %v1967 = vmul.f32 %v1829, %v1951
    %v1968 = vmul.f32 %v1844, %v1952
    %v1969 = vmul.f32 %v1859, %v1953
    %v1970 = vmul.f32 %v1874, %v1954
    %v1971 = vmul.f32 %v1889, %v1955
    %v1972 = vmul.f32 %v1904, %v1956
    %v1973 = vmul.f32 %v1919, %v1957
    %v1974 = vmul.f32 %v1934, %v1958
    %1983 = vrot.lane.b32.xlu0 %v1935, 32
    %v1984 = vpop.permute.xlu0 %1983
    %1985 = vrot.lane.b32.xlu0 %v1936, 32
    %v1986 = vpop.permute.xlu0 %1985
    %1987 = vrot.lane.b32.xlu0 %v1937, 32
    %v1988 = vpop.permute.xlu0 %1987
    %1989 = vrot.lane.b32.xlu0 %v1938, 32
    %v1990 = vpop.permute.xlu0 %1989
    %1991 = vrot.lane.b32.xlu0 %v1939, 32
    %v1992 = vpop.permute.xlu0 %1991
    %1993 = vrot.lane.b32.xlu0 %v1940, 32
    %v1994 = vpop.permute.xlu0 %1993
    %1995 = vrot.lane.b32.xlu0 %v1941, 32
    %v1996 = vpop.permute.xlu0 %1995
    %1997 = vrot.lane.b32.xlu0 %v1942, 32
    %v1998 = vpop.permute.xlu0 %1997
    %v2007 = vmul.f32 %v1829, %v1984
    %v2008 = vmul.f32 %v1844, %v1986
    %v2009 = vmul.f32 %v1859, %v1988
    %v2010 = vmul.f32 %v1874, %v1990
    %v2011 = vmul.f32 %v1889, %v1992
    %v2012 = vmul.f32 %v1904, %v1994
    %v2013 = vmul.f32 %v1919, %v1996
    %v2014 = vmul.f32 %v1934, %v1998
    %2023 = vrot.lane.b32.xlu0 %v2007, 32
    %v2024 = vpop.permute.xlu0 %2023
    %2025 = vrot.lane.b32.xlu0 %v2008, 32
    %v2026 = vpop.permute.xlu0 %2025
    %2027 = vrot.lane.b32.xlu0 %v2009, 32
    %v2028 = vpop.permute.xlu0 %2027
    %2029 = vrot.lane.b32.xlu0 %v2010, 32
    %v2030 = vpop.permute.xlu0 %2029
    %2031 = vrot.lane.b32.xlu0 %v2011, 32
    %v2032 = vpop.permute.xlu0 %2031
    %2033 = vrot.lane.b32.xlu0 %v2012, 32
    %v2034 = vpop.permute.xlu0 %2033
    %2035 = vrot.lane.b32.xlu0 %v2013, 32
    %v2036 = vpop.permute.xlu0 %2035
    %2037 = vrot.lane.b32.xlu0 %v2014, 32
    %v2038 = vpop.permute.xlu0 %2037
    %v2047 = vadd.f32 %v1967, %v2024
    %v2048 = vadd.f32 %v1968, %v2026
    %v2049 = vadd.f32 %v1969, %v2028
    %v2050 = vadd.f32 %v1970, %v2030
    %v2051 = vadd.f32 %v1971, %v2032
    %v2052 = vadd.f32 %v1972, %v2034
    %v2053 = vadd.f32 %v1973, %v2036
    %v2054 = vadd.f32 %v1974, %v2038
    %v2055 = vtanh.pop %v2047
    %v2056 = vtanh.pop %v2048
    %v2057 = vtanh.pop %v2049
    %v2058 = vtanh.pop %v2050
    %v2059 = vtanh.pop %v2051
    %v2060 = vtanh.pop %v2052
    %v2061 = vtanh.pop %v2053
    %v2062 = vtanh.pop %v2054
    %2071 = vrot.lane.b32.xlu0 %v2055, 32
    %v2072 = vpop.permute.xlu0 %2071
    %2073 = vrot.lane.b32.xlu0 %v2056, 32
    %v2074 = vpop.permute.xlu0 %2073
    %2075 = vrot.lane.b32.xlu0 %v2057, 32
    %v2076 = vpop.permute.xlu0 %2075
    %2077 = vrot.lane.b32.xlu0 %v2058, 32
    %v2078 = vpop.permute.xlu0 %2077
    %2079 = vrot.lane.b32.xlu0 %v2059, 32
    %v2080 = vpop.permute.xlu0 %2079
    %2081 = vrot.lane.b32.xlu0 %v2060, 32
    %v2082 = vpop.permute.xlu0 %2081
    %2083 = vrot.lane.b32.xlu0 %v2061, 32
    %v2084 = vpop.permute.xlu0 %2083
    %2085 = vrot.lane.b32.xlu0 %v2062, 32
    %v2086 = vpop.permute.xlu0 %2085
    %v2095 = vmul.f32 %v1829, %v2072
    %v2096 = vmul.f32 %v1844, %v2074
    %v2097 = vmul.f32 %v1859, %v2076
    %v2098 = vmul.f32 %v1874, %v2078
    %v2099 = vmul.f32 %v1889, %v2080
    %v2100 = vmul.f32 %v1904, %v2082
    %v2101 = vmul.f32 %v1919, %v2084
    %v2102 = vmul.f32 %v1934, %v2086
    %v2111 = vrot.slane %v2095, 4
    %v2112 = vrot.slane %v2096, 3
    %v2113 = vsel %vm545, %v2112, %v2111
    %v2114 = vrot.slane %v2097, 2
    %v2115 = vsel %vm548, %v2114, %v2113
    %v2116 = vrot.slane %v2098, 1
    %v2117 = vsel %vm551, %v2116, %v2115
    %v2118 = vsel %vm554, %v2099, %v2117
    %v2119 = vrot.slane %v2100, 7
    %v2120 = vsel %vm557, %v2119, %v2118
    %v2121 = vrot.slane %v2101, 6
    %v2122 = vsel %vm560, %v2121, %v2120
    %v2123 = vrot.slane %v2102, 5
    %v2124 = vsel %vm563, %v2123, %v2122
    %2125 = vrot.lane.b32.xlu0 %v2124, 64
    %v2126 = vpop.permute.xlu0 %2125
    %v2127 = vsel %vm192, %v2126, 0
    %2129 = vmatpush.msra.mxu0 0.0
    %2130 = vmatpush.msra.mxu0 0.0
    %2131 = vmatpush.msra.mxu0 0.0
    %2132 = vmatpush.msra.mxu0 0.0
    %2133 = vmatpush.msra.mxu0 0.0
    %2134 = vmatpush.msra.mxu0 0.0
    %2135 = vmatpush.msra.mxu0 0.0
    %2136 = vmatpush.msra.mxu0 0.0
    %2137 = vmatpush.msra.mxu0 0.0
    %2138 = vmatpush.msra.mxu0 0.0
    %2139 = vmatpush.msra.mxu0 0.0
    %2140 = vmatpush.msra.mxu0 0.0
    %2141 = vmatpush.msra.mxu0 %v121
    %2142 = vmatpush.msra.mxu0 %v120
    %2143 = vmatpush.msra.mxu0 %v119
    %2144 = vmatpush.msra.mxu0 %v118
    %2145 = vmatmul.f32.gmra.mxu0 %v2127
    %v2146 = vpop.f32.mrf.mxu0
    %v2147 = vadd.f32 0.0, %v2146
    %2148 = vdwg.mxu0
    %v2150 = vrot.slane %v2147, 3
    %v2151 = vrot.slane %v2147, 4
    %v2152 = vrot.slane %v2147, 5
    %v2153 = vrot.slane %v2147, 6
    %v2154 = vrot.slane %v2147, 7
    %v2155 = vrot.slane %v2147, 1
    %v2156 = vrot.slane %v2147, 2
    %v2165 = vadd.f32 %v169, %v2150
    %v2166 = vadd.f32 %v172, %v2151
    %v2167 = vadd.f32 %v175, %v2152
    %v2168 = vadd.f32 %v178, %v2153
    %v2169 = vadd.f32 %v181, %v2154
    %v2170 = vadd.f32 %v184, %v2147
    %v2171 = vadd.f32 %v187, %v2155
    %v2172 = vadd.f32 %v190, %v2156
    %v2173 = vxor.u32 %v2165, 2147483648
    %v2174 = vxor.u32 %v2166, 2147483648
    %v2175 = vxor.u32 %v2167, 2147483648
    %v2176 = vxor.u32 %v2168, 2147483648
    %v2177 = vxor.u32 %v2169, 2147483648
    %v2178 = vxor.u32 %v2170, 2147483648
    %v2179 = vxor.u32 %v2171, 2147483648
    %v2180 = vxor.u32 %v2172, 2147483648
    %v2181 = vmul.f32 %v2173, 1.442695
    %v2182 = vpow.pop %v2181
    %v2183 = vmul.f32 %v2174, 1.442695
    %v2184 = vpow.pop %v2183
    %v2185 = vmul.f32 %v2175, 1.442695
    %v2186 = vpow.pop %v2185
    %v2187 = vmul.f32 %v2176, 1.442695
    %v2188 = vpow.pop %v2187
    %v2189 = vmul.f32 %v2177, 1.442695
    %v2190 = vpow.pop %v2189
    %v2191 = vmul.f32 %v2178, 1.442695
    %v2192 = vpow.pop %v2191
    %v2193 = vmul.f32 %v2179, 1.442695
    %v2194 = vpow.pop %v2193
    %v2195 = vmul.f32 %v2180, 1.442695
    %v2196 = vpow.pop %v2195
    %v2197 = vadd.f32 %v2182, 1.0
    %v2198 = vadd.f32 %v2184, 1.0
    %v2199 = vadd.f32 %v2186, 1.0
    %v2200 = vadd.f32 %v2188, 1.0
    %v2201 = vadd.f32 %v2190, 1.0
    %v2202 = vadd.f32 %v2192, 1.0
    %v2203 = vadd.f32 %v2194, 1.0
    %v2204 = vadd.f32 %v2196, 1.0
    %v2205 = vrcp.pop %v2197
    %v2206 = vmul.f32 %v2197, %v2205
    %v2207 = vsub.f32 1.0, %v2206
    %v2208 = vmul.f32 %v2205, %v2207
    %v2209 = vadd.f32 %v2205, %v2208
    %vm2210 = vweird.f32 %v2197
    %vm2211 = vweird.f32 %v2205
    %vm2212 = vmor %vm2210, %vm2211
    %v2213 = vsel %vm2212, %v2205, %v2209
    %v2214 = vand.u32 2147483647, %v2197
    %vm2215 = vcmp.eq.f32.partialorder %v2214, 8.507059e+37
    %v2216 = vand.u32 %v2197, 2147483648
    %v2217 = vor.u32 1.1754944e-38, %v2216
    %v2218 = vsel %vm2215, %v2217, %v2213
    %v2219 = vmul.f32 1.0, %v2218
    %v2220 = vrcp.pop %v2198
    %v2221 = vmul.f32 %v2198, %v2220
    %v2222 = vsub.f32 1.0, %v2221
    %v2223 = vmul.f32 %v2220, %v2222
    %v2224 = vadd.f32 %v2220, %v2223
    %vm2225 = vweird.f32 %v2198
    %vm2226 = vweird.f32 %v2220
    %vm2227 = vmor %vm2225, %vm2226
    %v2228 = vsel %vm2227, %v2220, %v2224
    %v2229 = vand.u32 2147483647, %v2198
    %vm2230 = vcmp.eq.f32.partialorder %v2229, 8.507059e+37
    %v2231 = vand.u32 %v2198, 2147483648
    %v2232 = vor.u32 1.1754944e-38, %v2231
    %v2233 = vsel %vm2230, %v2232, %v2228
    %v2234 = vmul.f32 1.0, %v2233
    %v2235 = vrcp.pop %v2199
    %v2236 = vmul.f32 %v2199, %v2235
    %v2237 = vsub.f32 1.0, %v2236
    %v2238 = vmul.f32 %v2235, %v2237
    %v2239 = vadd.f32 %v2235, %v2238
    %vm2240 = vweird.f32 %v2199
    %vm2241 = vweird.f32 %v2235
    %vm2242 = vmor %vm2240, %vm2241
    %v2243 = vsel %vm2242, %v2235, %v2239
    %v2244 = vand.u32 2147483647, %v2199
    %vm2245 = vcmp.eq.f32.partialorder %v2244, 8.507059e+37
    %v2246 = vand.u32 %v2199, 2147483648
    %v2247 = vor.u32 1.1754944e-38, %v2246
    %v2248 = vsel %vm2245, %v2247, %v2243
    %v2249 = vmul.f32 1.0, %v2248
    %v2250 = vrcp.pop %v2200
    %v2251 = vmul.f32 %v2200, %v2250
    %v2252 = vsub.f32 1.0, %v2251
    %v2253 = vmul.f32 %v2250, %v2252
    %v2254 = vadd.f32 %v2250, %v2253
    %vm2255 = vweird.f32 %v2200
    %vm2256 = vweird.f32 %v2250
    %vm2257 = vmor %vm2255, %vm2256
    %v2258 = vsel %vm2257, %v2250, %v2254
    %v2259 = vand.u32 2147483647, %v2200
    %vm2260 = vcmp.eq.f32.partialorder %v2259, 8.507059e+37
    %v2261 = vand.u32 %v2200, 2147483648
    %v2262 = vor.u32 1.1754944e-38, %v2261
    %v2263 = vsel %vm2260, %v2262, %v2258
    %v2264 = vmul.f32 1.0, %v2263
    %v2265 = vrcp.pop %v2201
    %v2266 = vmul.f32 %v2201, %v2265
    %v2267 = vsub.f32 1.0, %v2266
    %v2268 = vmul.f32 %v2265, %v2267
    %v2269 = vadd.f32 %v2265, %v2268
    %vm2270 = vweird.f32 %v2201
    %vm2271 = vweird.f32 %v2265
    %vm2272 = vmor %vm2270, %vm2271
    %v2273 = vsel %vm2272, %v2265, %v2269
    %v2274 = vand.u32 2147483647, %v2201
    %vm2275 = vcmp.eq.f32.partialorder %v2274, 8.507059e+37
    %v2276 = vand.u32 %v2201, 2147483648
    %v2277 = vor.u32 1.1754944e-38, %v2276
    %v2278 = vsel %vm2275, %v2277, %v2273
    %v2279 = vmul.f32 1.0, %v2278
    %v2280 = vrcp.pop %v2202
    %v2281 = vmul.f32 %v2202, %v2280
    %v2282 = vsub.f32 1.0, %v2281
    %v2283 = vmul.f32 %v2280, %v2282
    %v2284 = vadd.f32 %v2280, %v2283
    %vm2285 = vweird.f32 %v2202
    %vm2286 = vweird.f32 %v2280
    %vm2287 = vmor %vm2285, %vm2286
    %v2288 = vsel %vm2287, %v2280, %v2284
    %v2289 = vand.u32 2147483647, %v2202
    %vm2290 = vcmp.eq.f32.partialorder %v2289, 8.507059e+37
    %v2291 = vand.u32 %v2202, 2147483648
    %v2292 = vor.u32 1.1754944e-38, %v2291
    %v2293 = vsel %vm2290, %v2292, %v2288
    %v2294 = vmul.f32 1.0, %v2293
    %v2295 = vrcp.pop %v2203
    %v2296 = vmul.f32 %v2203, %v2295
    %v2297 = vsub.f32 1.0, %v2296
    %v2298 = vmul.f32 %v2295, %v2297
    %v2299 = vadd.f32 %v2295, %v2298
    %vm2300 = vweird.f32 %v2203
    %vm2301 = vweird.f32 %v2295
    %vm2302 = vmor %vm2300, %vm2301
    %v2303 = vsel %vm2302, %v2295, %v2299
    %v2304 = vand.u32 2147483647, %v2203
    %vm2305 = vcmp.eq.f32.partialorder %v2304, 8.507059e+37
    %v2306 = vand.u32 %v2203, 2147483648
    %v2307 = vor.u32 1.1754944e-38, %v2306
    %v2308 = vsel %vm2305, %v2307, %v2303
    %v2309 = vmul.f32 1.0, %v2308
    %v2310 = vrcp.pop %v2204
    %v2311 = vmul.f32 %v2204, %v2310
    %v2312 = vsub.f32 1.0, %v2311
    %v2313 = vmul.f32 %v2310, %v2312
    %v2314 = vadd.f32 %v2310, %v2313
    %vm2315 = vweird.f32 %v2204
    %vm2316 = vweird.f32 %v2310
    %vm2317 = vmor %vm2315, %vm2316
    %v2318 = vsel %vm2317, %v2310, %v2314
    %v2319 = vand.u32 2147483647, %v2204
    %vm2320 = vcmp.eq.f32.partialorder %v2319, 8.507059e+37
    %v2321 = vand.u32 %v2204, 2147483648
    %v2322 = vor.u32 1.1754944e-38, %v2321
    %v2323 = vsel %vm2320, %v2322, %v2318
    %v2324 = vmul.f32 1.0, %v2323
    %v2325 = vtanh.pop %v2165
    %v2326 = vtanh.pop %v2166
    %v2327 = vtanh.pop %v2167
    %v2328 = vtanh.pop %v2168
    %v2329 = vtanh.pop %v2169
    %v2330 = vtanh.pop %v2170
    %v2331 = vtanh.pop %v2171
    %v2332 = vtanh.pop %v2172
    %v2341 = vrot.slane %v2047, 7
    %v2342 = vrot.slane %v2048, 7
    %v2343 = vrot.slane %v2049, 7
    %v2344 = vrot.slane %v2050, 7
    %v2345 = vrot.slane %v2051, 7
    %v2346 = vrot.slane %v2052, 7
    %v2347 = vrot.slane %v2053, 7
    %v2348 = vrot.slane %v2054, 7
    %v2357 = vmul.f32 %v2219, %v2341
    %v2358 = vmul.f32 %v2234, %v2342
    %v2359 = vmul.f32 %v2249, %v2343
    %v2360 = vmul.f32 %v2264, %v2344
    %v2361 = vmul.f32 %v2279, %v2345
    %v2362 = vmul.f32 %v2294, %v2346
    %v2363 = vmul.f32 %v2309, %v2347
    %v2364 = vmul.f32 %v2324, %v2348
    %2373 = vrot.lane.b32.xlu0 %v2325, 32
    %v2374 = vpop.permute.xlu0 %2373
    %2375 = vrot.lane.b32.xlu0 %v2326, 32
    %v2376 = vpop.permute.xlu0 %2375
    %2377 = vrot.lane.b32.xlu0 %v2327, 32
    %v2378 = vpop.permute.xlu0 %2377
    %2379 = vrot.lane.b32.xlu0 %v2328, 32
    %v2380 = vpop.permute.xlu0 %2379
    %2381 = vrot.lane.b32.xlu0 %v2329, 32
    %v2382 = vpop.permute.xlu0 %2381
    %2383 = vrot.lane.b32.xlu0 %v2330, 32
    %v2384 = vpop.permute.xlu0 %2383
    %2385 = vrot.lane.b32.xlu0 %v2331, 32
    %v2386 = vpop.permute.xlu0 %2385
    %2387 = vrot.lane.b32.xlu0 %v2332, 32
    %v2388 = vpop.permute.xlu0 %2387
    %v2397 = vmul.f32 %v2219, %v2374
    %v2398 = vmul.f32 %v2234, %v2376
    %v2399 = vmul.f32 %v2249, %v2378
    %v2400 = vmul.f32 %v2264, %v2380
    %v2401 = vmul.f32 %v2279, %v2382
    %v2402 = vmul.f32 %v2294, %v2384
    %v2403 = vmul.f32 %v2309, %v2386
    %v2404 = vmul.f32 %v2324, %v2388
    %2413 = vrot.lane.b32.xlu0 %v2397, 32
    %v2414 = vpop.permute.xlu0 %2413
    %2415 = vrot.lane.b32.xlu0 %v2398, 32
    %v2416 = vpop.permute.xlu0 %2415
    %2417 = vrot.lane.b32.xlu0 %v2399, 32
    %v2418 = vpop.permute.xlu0 %2417
    %2419 = vrot.lane.b32.xlu0 %v2400, 32
    %v2420 = vpop.permute.xlu0 %2419
    %2421 = vrot.lane.b32.xlu0 %v2401, 32
    %v2422 = vpop.permute.xlu0 %2421
    %2423 = vrot.lane.b32.xlu0 %v2402, 32
    %v2424 = vpop.permute.xlu0 %2423
    %2425 = vrot.lane.b32.xlu0 %v2403, 32
    %v2426 = vpop.permute.xlu0 %2425
    %2427 = vrot.lane.b32.xlu0 %v2404, 32
    %v2428 = vpop.permute.xlu0 %2427
    %v2437 = vadd.f32 %v2357, %v2414
    %v2438 = vadd.f32 %v2358, %v2416
    %v2439 = vadd.f32 %v2359, %v2418
    %v2440 = vadd.f32 %v2360, %v2420
    %v2441 = vadd.f32 %v2361, %v2422
    %v2442 = vadd.f32 %v2362, %v2424
    %v2443 = vadd.f32 %v2363, %v2426
    %v2444 = vadd.f32 %v2364, %v2428
    %v2445 = vtanh.pop %v2437
    %v2446 = vtanh.pop %v2438
    %v2447 = vtanh.pop %v2439
    %v2448 = vtanh.pop %v2440
    %v2449 = vtanh.pop %v2441
    %v2450 = vtanh.pop %v2442
    %v2451 = vtanh.pop %v2443
    %v2452 = vtanh.pop %v2444
    %2461 = vrot.lane.b32.xlu0 %v2445, 32
    %v2462 = vpop.permute.xlu0 %2461
    %2463 = vrot.lane.b32.xlu0 %v2446, 32
    %v2464 = vpop.permute.xlu0 %2463
    %2465 = vrot.lane.b32.xlu0 %v2447, 32
    %v2466 = vpop.permute.xlu0 %2465
    %2467 = vrot.lane.b32.xlu0 %v2448, 32
    %v2468 = vpop.permute.xlu0 %2467
    %2469 = vrot.lane.b32.xlu0 %v2449, 32
    %v2470 = vpop.permute.xlu0 %2469
    %2471 = vrot.lane.b32.xlu0 %v2450, 32
    %v2472 = vpop.permute.xlu0 %2471
    %2473 = vrot.lane.b32.xlu0 %v2451, 32
    %v2474 = vpop.permute.xlu0 %2473
    %2475 = vrot.lane.b32.xlu0 %v2452, 32
    %v2476 = vpop.permute.xlu0 %2475
    %v2485 = vmul.f32 %v2219, %v2462
    %v2486 = vmul.f32 %v2234, %v2464
    %v2487 = vmul.f32 %v2249, %v2466
    %v2488 = vmul.f32 %v2264, %v2468
    %v2489 = vmul.f32 %v2279, %v2470
    %v2490 = vmul.f32 %v2294, %v2472
    %v2491 = vmul.f32 %v2309, %v2474
    %v2492 = vmul.f32 %v2324, %v2476
    %v2501 = vrot.slane %v2485, 5
    %v2502 = vrot.slane %v2486, 4
    %v2503 = vsel %vm545, %v2502, %v2501
    %v2504 = vrot.slane %v2487, 3
    %v2505 = vsel %vm548, %v2504, %v2503
    %v2506 = vrot.slane %v2488, 2
    %v2507 = vsel %vm551, %v2506, %v2505
    %v2508 = vrot.slane %v2489, 1
    %v2509 = vsel %vm554, %v2508, %v2507
    %v2510 = vsel %vm557, %v2490, %v2509
    %v2511 = vrot.slane %v2491, 7
    %v2512 = vsel %vm560, %v2511, %v2510
    %v2513 = vrot.slane %v2492, 6
    %v2514 = vsel %vm563, %v2513, %v2512
    %2515 = vrot.lane.b32.xlu0 %v2514, 64
    %v2516 = vpop.permute.xlu0 %2515
    %v2517 = vsel %vm192, %v2516, 0
    %2519 = vmatpush.msra.mxu0 0.0
    %2520 = vmatpush.msra.mxu0 0.0
    %2521 = vmatpush.msra.mxu0 0.0
    %2522 = vmatpush.msra.mxu0 0.0
    %2523 = vmatpush.msra.mxu0 0.0
    %2524 = vmatpush.msra.mxu0 0.0
    %2525 = vmatpush.msra.mxu0 0.0
    %2526 = vmatpush.msra.mxu0 0.0
    %2527 = vmatpush.msra.mxu0 0.0
    %2528 = vmatpush.msra.mxu0 0.0
    %2529 = vmatpush.msra.mxu0 0.0
    %2530 = vmatpush.msra.mxu0 0.0
    %2531 = vmatpush.msra.mxu0 %v121
    %2532 = vmatpush.msra.mxu0 %v120
    %2533 = vmatpush.msra.mxu0 %v119
    %2534 = vmatpush.msra.mxu0 %v118
    %2535 = vmatmul.f32.gmra.mxu0 %v2517
    %v2536 = vpop.f32.mrf.mxu0
    %v2537 = vadd.f32 0.0, %v2536
    %2538 = vdwg.mxu0
    %v2540 = vrot.slane %v2537, 2
    %v2541 = vrot.slane %v2537, 3
    %v2542 = vrot.slane %v2537, 4
    %v2543 = vrot.slane %v2537, 5
    %v2544 = vrot.slane %v2537, 6
    %v2545 = vrot.slane %v2537, 7
    %v2546 = vrot.slane %v2537, 1
    %v2555 = vadd.f32 %v169, %v2540
    %v2556 = vadd.f32 %v172, %v2541
    %v2557 = vadd.f32 %v175, %v2542
    %v2558 = vadd.f32 %v178, %v2543
    %v2559 = vadd.f32 %v181, %v2544
    %v2560 = vadd.f32 %v184, %v2545
    %v2561 = vadd.f32 %v187, %v2537
    %v2562 = vadd.f32 %v190, %v2546
    %v2563 = vxor.u32 %v2555, 2147483648
    %v2564 = vxor.u32 %v2556, 2147483648
    %v2565 = vxor.u32 %v2557, 2147483648
    %v2566 = vxor.u32 %v2558, 2147483648
    %v2567 = vxor.u32 %v2559, 2147483648
    %v2568 = vxor.u32 %v2560, 2147483648
    %v2569 = vxor.u32 %v2561, 2147483648
    %v2570 = vxor.u32 %v2562, 2147483648
    %v2571 = vmul.f32 %v2563, 1.442695
    %v2572 = vpow.pop %v2571
    %v2573 = vmul.f32 %v2564, 1.442695
    %v2574 = vpow.pop %v2573
    %v2575 = vmul.f32 %v2565, 1.442695
    %v2576 = vpow.pop %v2575
    %v2577 = vmul.f32 %v2566, 1.442695
    %v2578 = vpow.pop %v2577
    %v2579 = vmul.f32 %v2567, 1.442695
    %v2580 = vpow.pop %v2579
    %v2581 = vmul.f32 %v2568, 1.442695
    %v2582 = vpow.pop %v2581
    %v2583 = vmul.f32 %v2569, 1.442695
    %v2584 = vpow.pop %v2583
    %v2585 = vmul.f32 %v2570, 1.442695
    %v2586 = vpow.pop %v2585
    %v2587 = vadd.f32 %v2572, 1.0
    %v2588 = vadd.f32 %v2574, 1.0
    %v2589 = vadd.f32 %v2576, 1.0
    %v2590 = vadd.f32 %v2578, 1.0
    %v2591 = vadd.f32 %v2580, 1.0
    %v2592 = vadd.f32 %v2582, 1.0
    %v2593 = vadd.f32 %v2584, 1.0
    %v2594 = vadd.f32 %v2586, 1.0
    %v2595 = vrcp.pop %v2587
    %v2596 = vmul.f32 %v2587, %v2595
    %v2597 = vsub.f32 1.0, %v2596
    %v2598 = vmul.f32 %v2595, %v2597
    %v2599 = vadd.f32 %v2595, %v2598
    %vm2600 = vweird.f32 %v2587
    %vm2601 = vweird.f32 %v2595
    %vm2602 = vmor %vm2600, %vm2601
    %v2603 = vsel %vm2602, %v2595, %v2599
    %v2604 = vand.u32 2147483647, %v2587
    %vm2605 = vcmp.eq.f32.partialorder %v2604, 8.507059e+37
    %v2606 = vand.u32 %v2587, 2147483648
    %v2607 = vor.u32 1.1754944e-38, %v2606
    %v2608 = vsel %vm2605, %v2607, %v2603
    %v2609 = vmul.f32 1.0, %v2608
    %v2610 = vrcp.pop %v2588
    %v2611 = vmul.f32 %v2588, %v2610
    %v2612 = vsub.f32 1.0, %v2611
    %v2613 = vmul.f32 %v2610, %v2612
    %v2614 = vadd.f32 %v2610, %v2613
    %vm2615 = vweird.f32 %v2588
    %vm2616 = vweird.f32 %v2610
    %vm2617 = vmor %vm2615, %vm2616
    %v2618 = vsel %vm2617, %v2610, %v2614
    %v2619 = vand.u32 2147483647, %v2588
    %vm2620 = vcmp.eq.f32.partialorder %v2619, 8.507059e+37
    %v2621 = vand.u32 %v2588, 2147483648
    %v2622 = vor.u32 1.1754944e-38, %v2621
    %v2623 = vsel %vm2620, %v2622, %v2618
    %v2624 = vmul.f32 1.0, %v2623
    %v2625 = vrcp.pop %v2589
    %v2626 = vmul.f32 %v2589, %v2625
    %v2627 = vsub.f32 1.0, %v2626
    %v2628 = vmul.f32 %v2625, %v2627
    %v2629 = vadd.f32 %v2625, %v2628
    %vm2630 = vweird.f32 %v2589
    %vm2631 = vweird.f32 %v2625
    %vm2632 = vmor %vm2630, %vm2631
    %v2633 = vsel %vm2632, %v2625, %v2629
    %v2634 = vand.u32 2147483647, %v2589
    %vm2635 = vcmp.eq.f32.partialorder %v2634, 8.507059e+37
    %v2636 = vand.u32 %v2589, 2147483648
    %v2637 = vor.u32 1.1754944e-38, %v2636
    %v2638 = vsel %vm2635, %v2637, %v2633
    %v2639 = vmul.f32 1.0, %v2638
    %v2640 = vrcp.pop %v2590
    %v2641 = vmul.f32 %v2590, %v2640
    %v2642 = vsub.f32 1.0, %v2641
    %v2643 = vmul.f32 %v2640, %v2642
    %v2644 = vadd.f32 %v2640, %v2643
    %vm2645 = vweird.f32 %v2590
    %vm2646 = vweird.f32 %v2640
    %vm2647 = vmor %vm2645, %vm2646
    %v2648 = vsel %vm2647, %v2640, %v2644
    %v2649 = vand.u32 2147483647, %v2590
    %vm2650 = vcmp.eq.f32.partialorder %v2649, 8.507059e+37
    %v2651 = vand.u32 %v2590, 2147483648
    %v2652 = vor.u32 1.1754944e-38, %v2651
    %v2653 = vsel %vm2650, %v2652, %v2648
    %v2654 = vmul.f32 1.0, %v2653
    %v2655 = vrcp.pop %v2591
    %v2656 = vmul.f32 %v2591, %v2655
    %v2657 = vsub.f32 1.0, %v2656
    %v2658 = vmul.f32 %v2655, %v2657
    %v2659 = vadd.f32 %v2655, %v2658
    %vm2660 = vweird.f32 %v2591
    %vm2661 = vweird.f32 %v2655
    %vm2662 = vmor %vm2660, %vm2661
    %v2663 = vsel %vm2662, %v2655, %v2659
    %v2664 = vand.u32 2147483647, %v2591
    %vm2665 = vcmp.eq.f32.partialorder %v2664, 8.507059e+37
    %v2666 = vand.u32 %v2591, 2147483648
    %v2667 = vor.u32 1.1754944e-38, %v2666
    %v2668 = vsel %vm2665, %v2667, %v2663
    %v2669 = vmul.f32 1.0, %v2668
    %v2670 = vrcp.pop %v2592
    %v2671 = vmul.f32 %v2592, %v2670
    %v2672 = vsub.f32 1.0, %v2671
    %v2673 = vmul.f32 %v2670, %v2672
    %v2674 = vadd.f32 %v2670, %v2673
    %vm2675 = vweird.f32 %v2592
    %vm2676 = vweird.f32 %v2670
    %vm2677 = vmor %vm2675, %vm2676
    %v2678 = vsel %vm2677, %v2670, %v2674
    %v2679 = vand.u32 2147483647, %v2592
    %vm2680 = vcmp.eq.f32.partialorder %v2679, 8.507059e+37
    %v2681 = vand.u32 %v2592, 2147483648
    %v2682 = vor.u32 1.1754944e-38, %v2681
    %v2683 = vsel %vm2680, %v2682, %v2678
    %v2684 = vmul.f32 1.0, %v2683
    %v2685 = vrcp.pop %v2593
    %v2686 = vmul.f32 %v2593, %v2685
    %v2687 = vsub.f32 1.0, %v2686
    %v2688 = vmul.f32 %v2685, %v2687
    %v2689 = vadd.f32 %v2685, %v2688
    %vm2690 = vweird.f32 %v2593
    %vm2691 = vweird.f32 %v2685
    %vm2692 = vmor %vm2690, %vm2691
    %v2693 = vsel %vm2692, %v2685, %v2689
    %v2694 = vand.u32 2147483647, %v2593
    %vm2695 = vcmp.eq.f32.partialorder %v2694, 8.507059e+37
    %v2696 = vand.u32 %v2593, 2147483648
    %v2697 = vor.u32 1.1754944e-38, %v2696
    %v2698 = vsel %vm2695, %v2697, %v2693
    %v2699 = vmul.f32 1.0, %v2698
    %v2700 = vrcp.pop %v2594
    %v2701 = vmul.f32 %v2594, %v2700
    %v2702 = vsub.f32 1.0, %v2701
    %v2703 = vmul.f32 %v2700, %v2702
    %v2704 = vadd.f32 %v2700, %v2703
    %vm2705 = vweird.f32 %v2594
    %vm2706 = vweird.f32 %v2700
    %vm2707 = vmor %vm2705, %vm2706
    %v2708 = vsel %vm2707, %v2700, %v2704
    %v2709 = vand.u32 2147483647, %v2594
    %vm2710 = vcmp.eq.f32.partialorder %v2709, 8.507059e+37
    %v2711 = vand.u32 %v2594, 2147483648
    %v2712 = vor.u32 1.1754944e-38, %v2711
    %v2713 = vsel %vm2710, %v2712, %v2708
    %v2714 = vmul.f32 1.0, %v2713
    %v2715 = vtanh.pop %v2555
    %v2716 = vtanh.pop %v2556
    %v2717 = vtanh.pop %v2557
    %v2718 = vtanh.pop %v2558
    %v2719 = vtanh.pop %v2559
    %v2720 = vtanh.pop %v2560
    %v2721 = vtanh.pop %v2561
    %v2722 = vtanh.pop %v2562
    %v2731 = vrot.slane %v2437, 7
    %v2732 = vrot.slane %v2438, 7
    %v2733 = vrot.slane %v2439, 7
    %v2734 = vrot.slane %v2440, 7
    %v2735 = vrot.slane %v2441, 7
    %v2736 = vrot.slane %v2442, 7
    %v2737 = vrot.slane %v2443, 7
    %v2738 = vrot.slane %v2444, 7
    %v2747 = vmul.f32 %v2609, %v2731
    %v2748 = vmul.f32 %v2624, %v2732
    %v2749 = vmul.f32 %v2639, %v2733
    %v2750 = vmul.f32 %v2654, %v2734
    %v2751 = vmul.f32 %v2669, %v2735
    %v2752 = vmul.f32 %v2684, %v2736
    %v2753 = vmul.f32 %v2699, %v2737
    %v2754 = vmul.f32 %v2714, %v2738
    %2763 = vrot.lane.b32.xlu0 %v2715, 32
    %v2764 = vpop.permute.xlu0 %2763
    %2765 = vrot.lane.b32.xlu0 %v2716, 32
    %v2766 = vpop.permute.xlu0 %2765
    %2767 = vrot.lane.b32.xlu0 %v2717, 32
    %v2768 = vpop.permute.xlu0 %2767
    %2769 = vrot.lane.b32.xlu0 %v2718, 32
    %v2770 = vpop.permute.xlu0 %2769
    %2771 = vrot.lane.b32.xlu0 %v2719, 32
    %v2772 = vpop.permute.xlu0 %2771
    %2773 = vrot.lane.b32.xlu0 %v2720, 32
    %v2774 = vpop.permute.xlu0 %2773
    %2775 = vrot.lane.b32.xlu0 %v2721, 32
    %v2776 = vpop.permute.xlu0 %2775
    %2777 = vrot.lane.b32.xlu0 %v2722, 32
    %v2778 = vpop.permute.xlu0 %2777
    %v2787 = vmul.f32 %v2609, %v2764
    %v2788 = vmul.f32 %v2624, %v2766
    %v2789 = vmul.f32 %v2639, %v2768
    %v2790 = vmul.f32 %v2654, %v2770
    %v2791 = vmul.f32 %v2669, %v2772
    %v2792 = vmul.f32 %v2684, %v2774
    %v2793 = vmul.f32 %v2699, %v2776
    %v2794 = vmul.f32 %v2714, %v2778
    %2803 = vrot.lane.b32.xlu0 %v2787, 32
    %v2804 = vpop.permute.xlu0 %2803
    %2805 = vrot.lane.b32.xlu0 %v2788, 32
    %v2806 = vpop.permute.xlu0 %2805
    %2807 = vrot.lane.b32.xlu0 %v2789, 32
    %v2808 = vpop.permute.xlu0 %2807
    %2809 = vrot.lane.b32.xlu0 %v2790, 32
    %v2810 = vpop.permute.xlu0 %2809
    %2811 = vrot.lane.b32.xlu0 %v2791, 32
    %v2812 = vpop.permute.xlu0 %2811
    %2813 = vrot.lane.b32.xlu0 %v2792, 32
    %v2814 = vpop.permute.xlu0 %2813
    %2815 = vrot.lane.b32.xlu0 %v2793, 32
    %v2816 = vpop.permute.xlu0 %2815
    %2817 = vrot.lane.b32.xlu0 %v2794, 32
    %v2818 = vpop.permute.xlu0 %2817
    %v2827 = vadd.f32 %v2747, %v2804
    %v2828 = vadd.f32 %v2748, %v2806
    %v2829 = vadd.f32 %v2749, %v2808
    %v2830 = vadd.f32 %v2750, %v2810
    %v2831 = vadd.f32 %v2751, %v2812
    %v2832 = vadd.f32 %v2752, %v2814
    %v2833 = vadd.f32 %v2753, %v2816
    %v2834 = vadd.f32 %v2754, %v2818
    %v2835 = vtanh.pop %v2827
    %v2836 = vtanh.pop %v2828
    %v2837 = vtanh.pop %v2829
    %v2838 = vtanh.pop %v2830
    %v2839 = vtanh.pop %v2831
    %v2840 = vtanh.pop %v2832
    %v2841 = vtanh.pop %v2833
    %v2842 = vtanh.pop %v2834
    %2851 = vrot.lane.b32.xlu0 %v2835, 32
    %v2852 = vpop.permute.xlu0 %2851
    %2853 = vrot.lane.b32.xlu0 %v2836, 32
    %v2854 = vpop.permute.xlu0 %2853
    %2855 = vrot.lane.b32.xlu0 %v2837, 32
    %v2856 = vpop.permute.xlu0 %2855
    %2857 = vrot.lane.b32.xlu0 %v2838, 32
    %v2858 = vpop.permute.xlu0 %2857
    %2859 = vrot.lane.b32.xlu0 %v2839, 32
    %v2860 = vpop.permute.xlu0 %2859
    %2861 = vrot.lane.b32.xlu0 %v2840, 32
    %v2862 = vpop.permute.xlu0 %2861
    %2863 = vrot.lane.b32.xlu0 %v2841, 32
    %v2864 = vpop.permute.xlu0 %2863
    %2865 = vrot.lane.b32.xlu0 %v2842, 32
    %v2866 = vpop.permute.xlu0 %2865
    %v2875 = vmul.f32 %v2609, %v2852
    %v2876 = vmul.f32 %v2624, %v2854
    %v2877 = vmul.f32 %v2639, %v2856
    %v2878 = vmul.f32 %v2654, %v2858
    %v2879 = vmul.f32 %v2669, %v2860
    %v2880 = vmul.f32 %v2684, %v2862
    %v2881 = vmul.f32 %v2699, %v2864
    %v2882 = vmul.f32 %v2714, %v2866
    %v2891 = vrot.slane %v2875, 6
    %v2892 = vrot.slane %v2876, 5
    %v2893 = vsel %vm545, %v2892, %v2891
    %v2894 = vrot.slane %v2877, 4
    %v2895 = vsel %vm548, %v2894, %v2893
    %v2896 = vrot.slane %v2878, 3
    %v2897 = vsel %vm551, %v2896, %v2895
    %v2898 = vrot.slane %v2879, 2
    %v2899 = vsel %vm554, %v2898, %v2897
    %v2900 = vrot.slane %v2880, 1
    %v2901 = vsel %vm557, %v2900, %v2899
    %v2902 = vsel %vm560, %v2881, %v2901
    %v2903 = vrot.slane %v2882, 7
    %v2904 = vsel %vm563, %v2903, %v2902
    %2905 = vrot.lane.b32.xlu0 %v2904, 64
    %v2906 = vpop.permute.xlu0 %2905
    %v2907 = vsel %vm192, %v2906, 0
    %2909 = vmatpush.msra.mxu0 0.0
    %2910 = vmatpush.msra.mxu0 0.0
    %2911 = vmatpush.msra.mxu0 0.0
    %2912 = vmatpush.msra.mxu0 0.0
    %2913 = vmatpush.msra.mxu0 0.0
    %2914 = vmatpush.msra.mxu0 0.0
    %2915 = vmatpush.msra.mxu0 0.0
    %2916 = vmatpush.msra.mxu0 0.0
    %2917 = vmatpush.msra.mxu0 0.0
    %2918 = vmatpush.msra.mxu0 0.0
    %2919 = vmatpush.msra.mxu0 0.0
    %2920 = vmatpush.msra.mxu0 0.0
    %2921 = vmatpush.msra.mxu0 %v121
    %2922 = vmatpush.msra.mxu0 %v120
    %2923 = vmatpush.msra.mxu0 %v119
    %2924 = vmatpush.msra.mxu0 %v118
    %2925 = vmatmul.f32.gmra.mxu0 %v2907
    %v2926 = vpop.f32.mrf.mxu0
    %v2927 = vadd.f32 0.0, %v2926
    %2928 = vdwg.mxu0
    %v2930 = vrot.slane %v2927, 1
    %v2931 = vrot.slane %v2927, 2
    %v2932 = vrot.slane %v2927, 3
    %v2933 = vrot.slane %v2927, 4
    %v2934 = vrot.slane %v2927, 5
    %v2935 = vrot.slane %v2927, 6
    %v2936 = vrot.slane %v2927, 7
    %v2945 = vadd.f32 %v169, %v2930
    %v2946 = vadd.f32 %v172, %v2931
    %v2947 = vadd.f32 %v175, %v2932
    %v2948 = vadd.f32 %v178, %v2933
    %v2949 = vadd.f32 %v181, %v2934
    %v2950 = vadd.f32 %v184, %v2935
    %v2951 = vadd.f32 %v187, %v2936
    %v2952 = vadd.f32 %v190, %v2927
    %v2953 = vxor.u32 %v2945, 2147483648
    %v2954 = vxor.u32 %v2946, 2147483648
    %v2955 = vxor.u32 %v2947, 2147483648
    %v2956 = vxor.u32 %v2948, 2147483648
    %v2957 = vxor.u32 %v2949, 2147483648
    %v2958 = vxor.u32 %v2950, 2147483648
    %v2959 = vxor.u32 %v2951, 2147483648
    %v2960 = vxor.u32 %v2952, 2147483648
    %v2961 = vmul.f32 %v2953, 1.442695
    %v2962 = vpow.pop %v2961
    %v2963 = vmul.f32 %v2954, 1.442695
    %v2964 = vpow.pop %v2963
    %v2965 = vmul.f32 %v2955, 1.442695
    %v2966 = vpow.pop %v2965
    %v2967 = vmul.f32 %v2956, 1.442695
    %v2968 = vpow.pop %v2967
    %v2969 = vmul.f32 %v2957, 1.442695
    %v2970 = vpow.pop %v2969
    %v2971 = vmul.f32 %v2958, 1.442695
    %v2972 = vpow.pop %v2971
    %v2973 = vmul.f32 %v2959, 1.442695
    %v2974 = vpow.pop %v2973
    %v2975 = vmul.f32 %v2960, 1.442695
    %v2976 = vpow.pop %v2975
    %v2977 = vadd.f32 %v2962, 1.0
    %v2978 = vadd.f32 %v2964, 1.0
    %v2979 = vadd.f32 %v2966, 1.0
    %v2980 = vadd.f32 %v2968, 1.0
    %v2981 = vadd.f32 %v2970, 1.0
    %v2982 = vadd.f32 %v2972, 1.0
    %v2983 = vadd.f32 %v2974, 1.0
    %v2984 = vadd.f32 %v2976, 1.0
    %v2985 = vrcp.pop %v2977
    %v2986 = vmul.f32 %v2977, %v2985
    %v2987 = vsub.f32 1.0, %v2986
    %v2988 = vmul.f32 %v2985, %v2987
    %v2989 = vadd.f32 %v2985, %v2988
    %vm2990 = vweird.f32 %v2977
    %vm2991 = vweird.f32 %v2985
    %vm2992 = vmor %vm2990, %vm2991
    %v2993 = vsel %vm2992, %v2985, %v2989
    %v2994 = vand.u32 2147483647, %v2977
    %vm2995 = vcmp.eq.f32.partialorder %v2994, 8.507059e+37
    %v2996 = vand.u32 %v2977, 2147483648
    %v2997 = vor.u32 1.1754944e-38, %v2996
    %v2998 = vsel %vm2995, %v2997, %v2993
    %v2999 = vmul.f32 1.0, %v2998
    %v3000 = vrcp.pop %v2978
    %v3001 = vmul.f32 %v2978, %v3000
    %v3002 = vsub.f32 1.0, %v3001
    %v3003 = vmul.f32 %v3000, %v3002
    %v3004 = vadd.f32 %v3000, %v3003
    %vm3005 = vweird.f32 %v2978
    %vm3006 = vweird.f32 %v3000
    %vm3007 = vmor %vm3005, %vm3006
    %v3008 = vsel %vm3007, %v3000, %v3004
    %v3009 = vand.u32 2147483647, %v2978
    %vm3010 = vcmp.eq.f32.partialorder %v3009, 8.507059e+37
    %v3011 = vand.u32 %v2978, 2147483648
    %v3012 = vor.u32 1.1754944e-38, %v3011
    %v3013 = vsel %vm3010, %v3012, %v3008
    %v3014 = vmul.f32 1.0, %v3013
    %v3015 = vrcp.pop %v2979
    %v3016 = vmul.f32 %v2979, %v3015
    %v3017 = vsub.f32 1.0, %v3016
    %v3018 = vmul.f32 %v3015, %v3017
    %v3019 = vadd.f32 %v3015, %v3018
    %vm3020 = vweird.f32 %v2979
    %vm3021 = vweird.f32 %v3015
    %vm3022 = vmor %vm3020, %vm3021
    %v3023 = vsel %vm3022, %v3015, %v3019
    %v3024 = vand.u32 2147483647, %v2979
    %vm3025 = vcmp.eq.f32.partialorder %v3024, 8.507059e+37
    %v3026 = vand.u32 %v2979, 2147483648
    %v3027 = vor.u32 1.1754944e-38, %v3026
    %v3028 = vsel %vm3025, %v3027, %v3023
    %v3029 = vmul.f32 1.0, %v3028
    %v3030 = vrcp.pop %v2980
    %v3031 = vmul.f32 %v2980, %v3030
    %v3032 = vsub.f32 1.0, %v3031
    %v3033 = vmul.f32 %v3030, %v3032
    %v3034 = vadd.f32 %v3030, %v3033
    %vm3035 = vweird.f32 %v2980
    %vm3036 = vweird.f32 %v3030
    %vm3037 = vmor %vm3035, %vm3036
    %v3038 = vsel %vm3037, %v3030, %v3034
    %v3039 = vand.u32 2147483647, %v2980
    %vm3040 = vcmp.eq.f32.partialorder %v3039, 8.507059e+37
    %v3041 = vand.u32 %v2980, 2147483648
    %v3042 = vor.u32 1.1754944e-38, %v3041
    %v3043 = vsel %vm3040, %v3042, %v3038
    %v3044 = vmul.f32 1.0, %v3043
    %v3045 = vrcp.pop %v2981
    %v3046 = vmul.f32 %v2981, %v3045
    %v3047 = vsub.f32 1.0, %v3046
    %v3048 = vmul.f32 %v3045, %v3047
    %v3049 = vadd.f32 %v3045, %v3048
    %vm3050 = vweird.f32 %v2981
    %vm3051 = vweird.f32 %v3045
    %vm3052 = vmor %vm3050, %vm3051
    %v3053 = vsel %vm3052, %v3045, %v3049
    %v3054 = vand.u32 2147483647, %v2981
    %vm3055 = vcmp.eq.f32.partialorder %v3054, 8.507059e+37
    %v3056 = vand.u32 %v2981, 2147483648
    %v3057 = vor.u32 1.1754944e-38, %v3056
    %v3058 = vsel %vm3055, %v3057, %v3053
    %v3059 = vmul.f32 1.0, %v3058
    %v3060 = vrcp.pop %v2982
    %v3061 = vmul.f32 %v2982, %v3060
    %v3062 = vsub.f32 1.0, %v3061
    %v3063 = vmul.f32 %v3060, %v3062
    %v3064 = vadd.f32 %v3060, %v3063
    %vm3065 = vweird.f32 %v2982
    %vm3066 = vweird.f32 %v3060
    %vm3067 = vmor %vm3065, %vm3066
    %v3068 = vsel %vm3067, %v3060, %v3064
    %v3069 = vand.u32 2147483647, %v2982
    %vm3070 = vcmp.eq.f32.partialorder %v3069, 8.507059e+37
    %v3071 = vand.u32 %v2982, 2147483648
    %v3072 = vor.u32 1.1754944e-38, %v3071
    %v3073 = vsel %vm3070, %v3072, %v3068
    %v3074 = vmul.f32 1.0, %v3073
    %v3075 = vrcp.pop %v2983
    %v3076 = vmul.f32 %v2983, %v3075
    %v3077 = vsub.f32 1.0, %v3076
    %v3078 = vmul.f32 %v3075, %v3077
    %v3079 = vadd.f32 %v3075, %v3078
    %vm3080 = vweird.f32 %v2983
    %vm3081 = vweird.f32 %v3075
    %vm3082 = vmor %vm3080, %vm3081
    %v3083 = vsel %vm3082, %v3075, %v3079
    %v3084 = vand.u32 2147483647, %v2983
    %vm3085 = vcmp.eq.f32.partialorder %v3084, 8.507059e+37
    %v3086 = vand.u32 %v2983, 2147483648
    %v3087 = vor.u32 1.1754944e-38, %v3086
    %v3088 = vsel %vm3085, %v3087, %v3083
    %v3089 = vmul.f32 1.0, %v3088
    %v3090 = vrcp.pop %v2984
    %v3091 = vmul.f32 %v2984, %v3090
    %v3092 = vsub.f32 1.0, %v3091
    %v3093 = vmul.f32 %v3090, %v3092
    %v3094 = vadd.f32 %v3090, %v3093
    %vm3095 = vweird.f32 %v2984
    %vm3096 = vweird.f32 %v3090
    %vm3097 = vmor %vm3095, %vm3096
    %v3098 = vsel %vm3097, %v3090, %v3094
    %v3099 = vand.u32 2147483647, %v2984
    %vm3100 = vcmp.eq.f32.partialorder %v3099, 8.507059e+37
    %v3101 = vand.u32 %v2984, 2147483648
    %v3102 = vor.u32 1.1754944e-38, %v3101
    %v3103 = vsel %vm3100, %v3102, %v3098
    %v3104 = vmul.f32 1.0, %v3103
    %v3105 = vtanh.pop %v2945
    %v3106 = vtanh.pop %v2946
    %v3107 = vtanh.pop %v2947
    %v3108 = vtanh.pop %v2948
    %v3109 = vtanh.pop %v2949
    %v3110 = vtanh.pop %v2950
    %v3111 = vtanh.pop %v2951
    %v3112 = vtanh.pop %v2952
    %v3121 = vrot.slane %v2827, 7
    %v3122 = vrot.slane %v2828, 7
    %v3123 = vrot.slane %v2829, 7
    %v3124 = vrot.slane %v2830, 7
    %v3125 = vrot.slane %v2831, 7
    %v3126 = vrot.slane %v2832, 7
    %v3127 = vrot.slane %v2833, 7
    %v3128 = vrot.slane %v2834, 7
    %v3137 = vmul.f32 %v2999, %v3121
    %v3138 = vmul.f32 %v3014, %v3122
    %v3139 = vmul.f32 %v3029, %v3123
    %v3140 = vmul.f32 %v3044, %v3124
    %v3141 = vmul.f32 %v3059, %v3125
    %v3142 = vmul.f32 %v3074, %v3126
    %v3143 = vmul.f32 %v3089, %v3127
    %v3144 = vmul.f32 %v3104, %v3128
    %3153 = vrot.lane.b32.xlu0 %v3105, 32
    %v3154 = vpop.permute.xlu0 %3153
    %3155 = vrot.lane.b32.xlu0 %v3106, 32
    %v3156 = vpop.permute.xlu0 %3155
    %3157 = vrot.lane.b32.xlu0 %v3107, 32
    %v3158 = vpop.permute.xlu0 %3157
    %3159 = vrot.lane.b32.xlu0 %v3108, 32
    %v3160 = vpop.permute.xlu0 %3159
    %3161 = vrot.lane.b32.xlu0 %v3109, 32
    %v3162 = vpop.permute.xlu0 %3161
    %3163 = vrot.lane.b32.xlu0 %v3110, 32
    %v3164 = vpop.permute.xlu0 %3163
    %3165 = vrot.lane.b32.xlu0 %v3111, 32
    %v3166 = vpop.permute.xlu0 %3165
    %3167 = vrot.lane.b32.xlu0 %v3112, 32
    %v3168 = vpop.permute.xlu0 %3167
    %v3177 = vmul.f32 %v2999, %v3154
    %v3178 = vmul.f32 %v3014, %v3156
    %v3179 = vmul.f32 %v3029, %v3158
    %v3180 = vmul.f32 %v3044, %v3160
    %v3181 = vmul.f32 %v3059, %v3162
    %v3182 = vmul.f32 %v3074, %v3164
    %v3183 = vmul.f32 %v3089, %v3166
    %v3184 = vmul.f32 %v3104, %v3168
    %3193 = vrot.lane.b32.xlu0 %v3177, 32
    %v3194 = vpop.permute.xlu0 %3193
    %3195 = vrot.lane.b32.xlu0 %v3178, 32
    %v3196 = vpop.permute.xlu0 %3195
    %3197 = vrot.lane.b32.xlu0 %v3179, 32
    %v3198 = vpop.permute.xlu0 %3197
    %3199 = vrot.lane.b32.xlu0 %v3180, 32
    %v3200 = vpop.permute.xlu0 %3199
    %3201 = vrot.lane.b32.xlu0 %v3181, 32
    %v3202 = vpop.permute.xlu0 %3201
    %3203 = vrot.lane.b32.xlu0 %v3182, 32
    %v3204 = vpop.permute.xlu0 %3203
    %3205 = vrot.lane.b32.xlu0 %v3183, 32
    %v3206 = vpop.permute.xlu0 %3205
    %3207 = vrot.lane.b32.xlu0 %v3184, 32
    %v3208 = vpop.permute.xlu0 %3207
    %v3217 = vadd.f32 %v3137, %v3194
    %v3218 = vadd.f32 %v3138, %v3196
    %v3219 = vadd.f32 %v3139, %v3198
    %v3220 = vadd.f32 %v3140, %v3200
    %v3221 = vadd.f32 %v3141, %v3202
    %v3222 = vadd.f32 %v3142, %v3204
    %v3223 = vadd.f32 %v3143, %v3206
    %v3224 = vadd.f32 %v3144, %v3208
    %v3225 = vtanh.pop %v3217
    %v3226 = vtanh.pop %v3218
    %v3227 = vtanh.pop %v3219
    %v3228 = vtanh.pop %v3220
    %v3229 = vtanh.pop %v3221
    %v3230 = vtanh.pop %v3222
    %v3231 = vtanh.pop %v3223
    %v3232 = vtanh.pop %v3224
    %3241 = vrot.lane.b32.xlu0 %v3225, 32
    %v3242 = vpop.permute.xlu0 %3241
    %3243 = vrot.lane.b32.xlu0 %v3226, 32
    %v3244 = vpop.permute.xlu0 %3243
    %3245 = vrot.lane.b32.xlu0 %v3227, 32
    %v3246 = vpop.permute.xlu0 %3245
    %3247 = vrot.lane.b32.xlu0 %v3228, 32
    %v3248 = vpop.permute.xlu0 %3247
    %3249 = vrot.lane.b32.xlu0 %v3229, 32
    %v3250 = vpop.permute.xlu0 %3249
    %3251 = vrot.lane.b32.xlu0 %v3230, 32
    %v3252 = vpop.permute.xlu0 %3251
    %3253 = vrot.lane.b32.xlu0 %v3231, 32
    %v3254 = vpop.permute.xlu0 %3253
    %3255 = vrot.lane.b32.xlu0 %v3232, 32
    %v3256 = vpop.permute.xlu0 %3255
    %v3265 = vmul.f32 %v2999, %v3242
    %v3266 = vmul.f32 %v3014, %v3244
    %v3267 = vmul.f32 %v3029, %v3246
    %v3268 = vmul.f32 %v3044, %v3248
    %v3269 = vmul.f32 %v3059, %v3250
    %v3270 = vmul.f32 %v3074, %v3252
    %v3271 = vmul.f32 %v3089, %v3254
    %v3272 = vmul.f32 %v3104, %v3256
    %v3273 = vld [vmem:[#allocation8] sm:$0xff]
    %v3274 = vld [vmem:[#allocation8 + $0x8] sm:$0xff]
    %v3275 = vld [vmem:[#allocation8 + $0x10] sm:$0xff]
    %v3276 = vld [vmem:[#allocation8 + $0x18] sm:$0xff]
    %v3277 = vld [vmem:[%s5] sm:$0x1]
    %v3279 = vperm.slane %v3277, 0
    %v3289 = vrot.slane %v3265, 7
    %v3290 = vrot.slane %v3266, 6
    %v3291 = vsel %vm545, %v3290, %v3289
    %v3292 = vrot.slane %v3267, 5
    %v3293 = vsel %vm548, %v3292, %v3291
    %v3294 = vrot.slane %v3268, 4
    %v3295 = vsel %vm551, %v3294, %v3293
    %v3296 = vrot.slane %v3269, 3
    %v3297 = vsel %vm554, %v3296, %v3295
    %v3298 = vrot.slane %v3270, 2
    %v3299 = vsel %vm557, %v3298, %v3297
    %v3300 = vrot.slane %v3271, 1
    %v3301 = vsel %vm560, %v3300, %v3299
    %v3302 = vsel %vm563, %v3272, %v3301
    %3303 = vrot.lane.b32.xlu0 %v3302, 64
    %v3304 = vpop.permute.xlu0 %3303
    %v3305 = vsel %vm192, %v3304, 0
    %3307 = vmatpush.msra.mxu0 0.0
    %3308 = vmatpush.msra.mxu0 0.0
    %3309 = vmatpush.msra.mxu0 0.0
    %3310 = vmatpush.msra.mxu0 0.0
    %3311 = vmatpush.msra.mxu0 0.0
    %3312 = vmatpush.msra.mxu0 0.0
    %3313 = vmatpush.msra.mxu0 0.0
    %3314 = vmatpush.msra.mxu0 0.0
    %3315 = vmatpush.msra.mxu0 0.0
    %3316 = vmatpush.msra.mxu0 0.0
    %3317 = vmatpush.msra.mxu0 0.0
    %3318 = vmatpush.msra.mxu0 0.0
    %3319 = vmatpush.msra.mxu0 %v3276
    %3320 = vmatpush.msra.mxu0 %v3275
    %3321 = vmatpush.msra.mxu0 %v3274
    %3322 = vmatpush.msra.mxu0 %v3273
    %3323 = vmatmul.f32.gmra.mxu0 %v3305
    %v3324 = vpop.f32.mrf.mxu0
    %v3325 = vadd.f32 %v3279, %v3324
    %3326 = vdwg.mxu0
    %v3327 = vmax.f32 %v3325, 0.0
    %v3328 = vld [vmem:[#allocation10] sm:$0xff]
    %v3329 = vld [vmem:[#allocation10 + $0x8] sm:$0xff]
    %v3330 = vld [vmem:[#allocation10 + $0x10] sm:$0xff]
    %v3331 = vld [vmem:[#allocation10 + $0x18] sm:$0xff]
    %v3332 = vld [vmem:[%s7] sm:$0x1]
    %v3334 = vperm.slane %v3332, 0
    %v3337 = vsel %vm192, %v3327, 0
    %3339 = vmatpush.msra.mxu0 0.0
    %3340 = vmatpush.msra.mxu0 0.0
    %3341 = vmatpush.msra.mxu0 0.0
    %3342 = vmatpush.msra.mxu0 0.0
    %3343 = vmatpush.msra.mxu0 0.0
    %3344 = vmatpush.msra.mxu0 0.0
    %3345 = vmatpush.msra.mxu0 0.0
    %3346 = vmatpush.msra.mxu0 0.0
    %3347 = vmatpush.msra.mxu0 0.0
    %3348 = vmatpush.msra.mxu0 0.0
    %3349 = vmatpush.msra.mxu0 0.0
    %3350 = vmatpush.msra.mxu0 0.0
    %3351 = vmatpush.msra.mxu0 %v3331
    %3352 = vmatpush.msra.mxu0 %v3330
    %3353 = vmatpush.msra.mxu0 %v3329
    %3354 = vmatpush.msra.mxu0 %v3328
    %3355 = vmatmul.f32.gmra.mxu0 %v3337
    %v3356 = vpop.f32.mrf.mxu0
    %v3357 = vadd.f32 %v3334, %v3356
    %3358 = vdwg.mxu0
    %3359 = vst [vmem:[#allocation11] sm:$0xff] %v3357
    // Predicated region
    $region54: #{tpu_custom_call.1} parent=1 // pred_check
      _
    $region55: #{tpu_custom_call.1} parent=1 // pred_check_branch
      %3361 = sbr.rel (0) target = $region57
    $region56: #{tpu_custom_call.1} parent=1 // pred_region
      %3363 = vsyncadd [#allocation4], 0
      %s3365 = sshll.u32 [#allocation11], 4
      %s3366 = int_to_ptr.vmem [resolvable:$true] %s3365
      %s3367 = sshll.u32 %s8, 4
      %s3368 = int_to_ptr.hbm [resolvable:$true] %s3367
      %3370 = dma.vmem_to_hbm [thread:$0]  %s3366, 128, %s3368, [#allocation4]
    $region57: #{tpu_custom_call.1} parent=1 // pred_fallthru
      _
    // Predicated region
    $region58: #{tpu_custom_call.1} parent=1 // pred_check
      _
    $region59: #{tpu_custom_call.1} parent=1 // pred_check_branch
      %3372 = sbr.rel (0) target = $region61
    $region60: #{tpu_custom_call.1} parent=1 // pred_region
      %3374 = dma.done [#allocation4], 128
    $region61: #{tpu_custom_call.1} parent=1 // pred_fallthru
      _
    %3375 = vsyncpa [#allocation3], 1
    %3376 = vsyncpa [#allocation6], 1
    %3377 = vsyncpa [#allocation9], 1
    %3378 = vsyncpa [#allocation4], 1

</llo_original>
